<compile_context>
chip_gen: v7x
topology: tpu7x:2x2x1
jax: 0.10.0
libtpu: 0.0.40
codegen_flags: <defaults>
</compile_context>

<pallas_src>
import functools
import math

import jax
import jax.numpy as jnp
from jax.experimental import pallas as pl
from jax.experimental.pallas import tpu as pltpu


NEG_INF = -1e30  # finite "minus infinity": keeps exp()/softmax NaN-free


def fused_flash_mha_kernel(
    xq_ref, xkv_ref, wq_ref, wk_ref, wv_ref, wproj_ref, bproj_ref,   # inputs
    o_ref,                                                            # output
    q_scr, acc_scr, m_scr, l_scr,                                     # scratch
    *, num_heads, head_size, scale, compute_dtype, approx_recip):
    """One (batch-block, q-block, kv-block) step: fused QKV projection ->
    causal online-softmax attention (all heads) -> deferred output projection."""
    qi = pl.program_id(1)
    ki = pl.program_id(2)
    num_kv = pl.num_programs(2)

    b_blk, blk_q, C = xq_ref.shape
    blk_kv = xkv_ref.shape[1]
    H, D = num_heads, head_size
    mq = b_blk * blk_q          # fattened M for the projection matmuls
    mk = b_blk * blk_kv

    q_start = qi * blk_q
    k_start = ki * blk_kv

    # ---- new (batch, q)-block: project Q once (reused for all KV steps), reset state.
    @pl.when(ki == 0)
    def _start_q_block():
        xq = xq_ref[...].reshape(mq, C).astype(compute_dtype)
        q = jnp.dot(xq, wq_ref[...], preferred_element_type=jnp.float32)   # (mq, C)
        q = q * scale                         # fold 1/sqrt(D) into q, in f32, pre-cast
        q_scr[...] = q.reshape(b_blk, blk_q, C).astype(compute_dtype)
        m_scr[...] = jnp.full(m_scr.shape, NEG_INF, dtype=jnp.float32)
        l_scr[...] = jnp.zeros(l_scr.shape, dtype=jnp.float32)
        acc_scr[...] = jnp.zeros(acc_scr.shape, dtype=jnp.float32)

    # ---- online-softmax update; skip KV blocks that lie entirely in the future.
    @pl.when(k_start <= q_start + (blk_q - 1))
    def _update():
        xkv = xkv_ref[...].reshape(mk, C).astype(compute_dtype)
        k_all = jnp.dot(xkv, wk_ref[...], preferred_element_type=jnp.float32)
        v_all = jnp.dot(xkv, wv_ref[...], preferred_element_type=jnp.float32)
        k_all = k_all.astype(compute_dtype).reshape(b_blk, blk_kv, C)
        v_all = v_all.astype(compute_dtype).reshape(b_blk, blk_kv, C)

        # Additive causal bias (0 / -1e30): one compare+select per tile, shared by
        # every batch row and head -> per-head cost is a single VPU add.
        rows = q_start + jax.lax.broadcasted_iota(jnp.int32, (blk_q, blk_kv), 0)
        cols = k_start + jax.lax.broadcasted_iota(jnp.int32, (blk_q, blk_kv), 1)
        bias = jnp.where(cols <= rows, 0.0, NEG_INF).astype(jnp.float32)
        bias = bias[None, :, :]               # broadcast over batch rows

        for h in range(H):                    # static unroll over heads
            sl = slice(h * D, (h + 1) * D)
            q = q_scr[:, :, sl]               # (b_blk, blk_q, D), pre-scaled
            k = k_all[:, :, sl]
            v = v_all[:, :, sl]

            # batched q @ k^T, contracting on D (no transposed copy materialized)
            s = jax.lax.dot_general(
                q, k, (((2,), (2,)), ((0,), (0,))),
                preferred_element_type=jnp.float32)        # (b_blk, blk_q, blk_kv)
            s = s + bias

            m_prev = m_scr[h]                               # (b_blk, blk_q, 1)
            m_new = jnp.maximum(m_prev, jnp.max(s, axis=-1, keepdims=True))
            alpha = jnp.exp(m_prev - m_new)
            p = jnp.exp(s - m_new)                          # f32 softmax numerator
            l_scr[h] = alpha * l_scr[h] + jnp.sum(p, axis=-1, keepdims=True)

            # batched p @ v, contracting on the KV dim
            pv = jax.lax.dot_general(
                p.astype(compute_dtype), v, (((2,), (1,)), ((0,), (0,))),
                preferred_element_type=jnp.float32)         # (b_blk, blk_q, D)
            acc_scr[:, :, sl] = alpha * acc_scr[:, :, sl] + pv
            m_scr[h] = m_new

    # ---- last KV step: normalize, ONE deferred K=C projection matmul, store.
    @pl.when(ki == num_kv - 1)
    def _finalize():
        for h in range(H):                    # per-head 1/l (EUP reciprocal)
            sl = slice(h * D, (h + 1) * D)
            inv_l = pl.reciprocal(l_scr[h], approx=approx_recip)
            acc_scr[:, :, sl] = acc_scr[:, :, sl] * inv_l
        y2d = acc_scr[...].reshape(mq, C).astype(compute_dtype)   # head-concat (mq, C)
        out = jnp.dot(y2d, wproj_ref[...], preferred_element_type=jnp.float32)
        out = out + bproj_ref[...].astype(jnp.float32)
        o_ref[...] = out.reshape(b_blk, blk_q, C).astype(o_ref.dtype)


def multi_head_attention(x, wq, wk, wv, wproj_t, bproj, *, num_heads, head_size,
                         compute_dtype=jnp.float32, approx_recip=None,
                         block_q=None, block_kv=None, block_b=None):
    """x: (B, T, C); wq/wk/wv: (C, C) all-head projections; wproj_t: (C, C) = W_proj^T;
    bproj: (1, C).  compute_dtype=bfloat16 for the v6e/v7x MXU path (f32 accumulation
    and softmax are kept either way)."""
    B, T, C = x.shape
    assert num_heads * head_size == C
    assert wq.shape == (C, C) and wk.shape == (C, C) and wv.shape == (C, C)

    if block_q is None:
        block_q = min(T, 128)
    if block_kv is None:
        block_kv = min(T, 128)
    assert T % block_q == 0 and T % block_kv == 0
    if block_b is None:
        # Fatten the matmul M dimension toward ~256 rows per grid step.
        cap = max(1, 256 // block_q)
        block_b = 1
        for cand in range(min(B, cap), 0, -1):
            if B % cand == 0:
                block_b = cand
                break
    assert B % block_b == 0
    if approx_recip is None:
        # exact reciprocal on the f32 (parity) path, approx (EUP) on the bf16 path
        approx_recip = compute_dtype != jnp.float32

    scale = 1.0 / math.sqrt(head_size)

    # Cast MXU operands once in the wrapper: halves activation/weight DMA bytes and
    # resident-weight VMEM in bf16 mode (weights stay VMEM-resident via constant
    # index_maps, so they are not re-fetched per grid step).
    x_c = x.astype(compute_dtype)
    wq_c = wq.astype(compute_dtype)
    wk_c = wk.astype(compute_dtype)
    wv_c = wv.astype(compute_dtype)
    wproj_c = wproj_t.astype(compute_dtype)
    bproj_f32 = bproj.astype(jnp.float32)

    kernel = functools.partial(
        fused_flash_mha_kernel,
        num_heads=num_heads, head_size=head_size, scale=scale,
        compute_dtype=compute_dtype, approx_recip=approx_recip)

    grid = (B // block_b, T // block_q, T // block_kv)
    return pl.pallas_call(
        kernel,
        out_shape=jax.ShapeDtypeStruct((B, T, C), x.dtype),
        grid=grid,
        in_specs=[
            pl.BlockSpec((block_b, block_q, C), lambda b, qi, ki: (b, qi, 0)),   # x (Q rows)
            pl.BlockSpec((block_b, block_kv, C), lambda b, qi, ki: (b, ki, 0)),  # x (KV rows)
            pl.BlockSpec((C, C), lambda b, qi, ki: (0, 0)),   # Wq  (all heads, resident)
            pl.BlockSpec((C, C), lambda b, qi, ki: (0, 0)),   # Wk
            pl.BlockSpec((C, C), lambda b, qi, ki: (0, 0)),   # Wv
            pl.BlockSpec((C, C), lambda b, qi, ki: (0, 0)),   # Wproj^T
            pl.BlockSpec((1, C), lambda b, qi, ki: (0, 0)),   # proj bias
        ],
        # NOTE: last dim of the stored block is C; production n_embed >= 128 makes
        # this lane-dense (the demo C=32 is unavoidably a masked store).
        out_specs=pl.BlockSpec((block_b, block_q, C), lambda b, qi, ki: (b, qi, 0)),
        scratch_shapes=[
            pltpu.VMEM((block_b, block_q, C), compute_dtype),            # scaled Q
            pltpu.VMEM((block_b, block_q, C), jnp.float32),              # head-concat acc
            pltpu.VMEM((num_heads, block_b, block_q, 1), jnp.float32),   # running max m
            pltpu.VMEM((num_heads, block_b, block_q, 1), jnp.float32),   # running denom l
        ],
        compiler_params=pltpu.CompilerParams(
            dimension_semantics=("parallel", "parallel", "arbitrary"),
            vmem_limit_bytes=64 * 1024 * 1024),
    )(x_c, x_c, wq_c, wk_c, wv_c, wproj_c, bproj_f32)


def pack_head_weights(w):
    """Per-head (H, C, D) weights -> all-head (C, H*D) projection matrix."""
    H, C, D = w.shape
    return jnp.transpose(w, (1, 0, 2)).reshape(C, H * D)


def reference_mha(x, wq, wk, wv, wproj_t, bproj):
    """Plain-JAX reference replicating the PyTorch forward (eval mode)."""
    B, T, C = x.shape
    H, _, D = wq.shape
    q = jnp.einsum("btc,hcd->bhtd", x, wq)
    k = jnp.einsum("btc,hcd->bhtd", x, wk)
    v = jnp.einsum("btc,hcd->bhtd", x, wv)
    wei = jnp.einsum("bhtd,bhsd->bhts", q, k) / math.sqrt(D)
    mask = jnp.tril(jnp.ones((T, T), dtype=bool))
    wei = jnp.where(mask, wei, -jnp.inf)
    wei = jax.nn.softmax(wei, axis=-1)
    out = jnp.einsum("bhts,bhsd->bhtd", wei, v)
    out = jnp.transpose(out, (0, 2, 1, 3)).reshape(B, T, C)
    return out @ wproj_t + bproj


if __name__ == "__main__":
    # Small shapes consistent with the module: n_embed = num_heads * head_size.
    B, T = 2, 8
    num_heads, head_size = 4, 8
    n_embed = num_heads * head_size  # 32

    key = jax.random.PRNGKey(0)
    kx, kq, kk, kv_, kp, kb = jax.random.split(key, 6)

    x = jax.random.normal(kx, (B, T, n_embed), dtype=jnp.float32)
    # deterministic synthetic parameters (per-head, like the PyTorch module)
    wq_h = jax.random.normal(kq, (num_heads, n_embed, head_size), jnp.float32) * 0.05
    wk_h = jax.random.normal(kk, (num_heads, n_embed, head_size), jnp.float32) * 0.05
    wv_h = jax.random.normal(kv_, (num_heads, n_embed, head_size), jnp.float32) * 0.05
    wproj_t = jax.random.normal(kp, (n_embed, n_embed), jnp.float32) * 0.05  # stored as W^T
    bproj = jax.random.normal(kb, (1, n_embed), jnp.float32) * 0.05

    wq = pack_head_weights(wq_h)   # (C, C)
    wk = pack_head_weights(wk_h)
    wv = pack_head_weights(wv_h)

    ref = reference_mha(x, wq_h, wk_h, wv_h, wproj_t, bproj)

    # f32 path: exact-parity check against the reference.
    out_f32 = multi_head_attention(x, wq, wk, wv, wproj_t, bproj,
                                   num_heads=num_heads, head_size=head_size,
                                   compute_dtype=jnp.float32)
    out_f32 = jax.block_until_ready(out_f32)
    assert out_f32.shape == (B, T, n_embed)
    assert jnp.allclose(out_f32, ref, atol=1e-5, rtol=1e-5), "f32 mismatch vs reference"

    # bf16 MXU-operand path (production setting on v6e/v7x): looser tolerance.
    out_bf16 = multi_head_attention(x, wq, wk, wv, wproj_t, bproj,
                                    num_heads=num_heads, head_size=head_size,
                                    compute_dtype=jnp.bfloat16)
    out_bf16 = jax.block_until_ready(out_bf16)
    assert out_bf16.shape == (B, T, n_embed) and out_bf16.dtype == x.dtype
    assert jnp.allclose(out_bf16, ref, atol=3e-2, rtol=3e-2), "bf16 mismatch vs reference"

    print("KERNEL_OK")
</pallas_src>

<mosaic_0001>
module attributes {stable_mosaic.version = 11 : i64} {
  func.func @fused_flash_mha_kernel(%arg0: i32, %arg1: i32, %arg2: i32, %arg3: memref<2x8x32xf32, #tpu.memory_space<vmem>>, %arg4: memref<2x8x32xf32, #tpu.memory_space<vmem>>, %arg5: memref<32x32xf32, #tpu.memory_space<vmem>>, %arg6: memref<32x32xf32, #tpu.memory_space<vmem>>, %arg7: memref<32x32xf32, #tpu.memory_space<vmem>>, %arg8: memref<32x32xf32, #tpu.memory_space<vmem>>, %arg9: memref<1x32xf32, #tpu.memory_space<vmem>>, %arg10: memref<2x8x32xf32, #tpu.memory_space<vmem>>, %arg11: memref<2x8x32xf32, #tpu.memory_space<vmem>>, %arg12: memref<2x8x32xf32, #tpu.memory_space<vmem>>, %arg13: memref<4x2x8x1xf32, #tpu.memory_space<vmem>>, %arg14: memref<4x2x8x1xf32, #tpu.memory_space<vmem>>) attributes {dimension_semantics = [#tpu.dimension_semantics<parallel>, #tpu.dimension_semantics<parallel>, #tpu.dimension_semantics<arbitrary>], iteration_bounds = array<i64: 1, 1, 1>, scalar_prefetch = 0 : i64, scratch_operands = 4 : i64, tpu.core_type = #tpu.core_type<tc>, window_params = [{transform_indices = @transform_0, window_bounds = array<i64: 2, 8, 32>}, {transform_indices = @transform_1, window_bounds = array<i64: 2, 8, 32>}, {pipeline_mode = #tpu.pipeline_mode<synchronous>, transform_indices = @transform_2, window_bounds = array<i64: 32, 32>}, {pipeline_mode = #tpu.pipeline_mode<synchronous>, transform_indices = @transform_3, window_bounds = array<i64: 32, 32>}, {pipeline_mode = #tpu.pipeline_mode<synchronous>, transform_indices = @transform_4, window_bounds = array<i64: 32, 32>}, {pipeline_mode = #tpu.pipeline_mode<synchronous>, transform_indices = @transform_5, window_bounds = array<i64: 32, 32>}, {pipeline_mode = #tpu.pipeline_mode<synchronous>, transform_indices = @transform_6, window_bounds = array<i64: 1, 32>}, {transform_indices = @transform_7, window_bounds = array<i64: 2, 8, 32>}]} {
    %c8_i32 = arith.constant 8 : i32
    %0 = arith.muli %arg1, %c8_i32 : i32
    %c8_i32_0 = arith.constant 8 : i32
    %1 = arith.muli %arg2, %c8_i32_0 : i32
    %c0_i32 = arith.constant 0 : i32
    %2 = arith.cmpi eq, %arg2, %c0_i32 : i32
    %3 = arith.extui %2 : i1 to i32
    %c0_i32_1 = arith.constant 0 : i32
    %4 = arith.cmpi ne, %3, %c0_i32_1 : i32
    scf.if %4 {
      %c0 = arith.constant 0 : index
      %c0_5 = arith.constant 0 : index
      %c0_6 = arith.constant 0 : index
      %12 = vector.load %arg3[%c0, %c0_5, %c0_6] : memref<2x8x32xf32, #tpu.memory_space<vmem>>, vector<2x8x32xf32>
      %13 = vector.shape_cast %12 : vector<2x8x32xf32> to vector<16x32xf32>
      %c0_7 = arith.constant 0 : index
      %c0_8 = arith.constant 0 : index
      %14 = vector.load %arg5[%c0_7, %c0_8] : memref<32x32xf32, #tpu.memory_space<vmem>>, vector<32x32xf32>
      %cst = arith.constant dense<0.000000e+00> : vector<16x32xf32>
      %15 = tpu.matmul %13, %14, %cst {dimension_numbers = #tpu.dot_dimension_numbers<[1], [0], [0], [1], [0, 0, 1, 1], [], []>} : vector<16x32xf32>, vector<32x32xf32>, vector<16x32xf32> -> vector<16x32xf32>
      %cst_9 = arith.constant 0.353553385 : f32
      %16 = vector.broadcast %cst_9 : f32 to vector<16x32xf32>
      %17 = arith.mulf %15, %16 : vector<16x32xf32>
      %18 = vector.shape_cast %17 : vector<16x32xf32> to vector<2x8x32xf32>
      %c0_10 = arith.constant 0 : index
      %c0_11 = arith.constant 0 : index
      %c0_12 = arith.constant 0 : index
      %19 = vector.load %arg11[%c0_10, %c0_11, %c0_12] : memref<2x8x32xf32, #tpu.memory_space<vmem>>, vector<2x8x32xf32>
      tpu.vector_store %arg11[%c0_10, %c0_11, %c0_12], %18 {strides = array<i32>} : memref<2x8x32xf32, #tpu.memory_space<vmem>>, vector<2x8x32xf32>,
      %cst_13 = arith.constant -1.000000e+30 : f32
      %20 = vector.broadcast %cst_13 : f32 to vector<4x2x8x1xf32>
      %c0_14 = arith.constant 0 : index
      %c0_15 = arith.constant 0 : index
      %c0_16 = arith.constant 0 : index
      %c0_17 = arith.constant 0 : index
      %21 = vector.load %arg13[%c0_14, %c0_15, %c0_16, %c0_17] : memref<4x2x8x1xf32, #tpu.memory_space<vmem>>, vector<4x2x8x1xf32>
      tpu.vector_store %arg13[%c0_14, %c0_15, %c0_16, %c0_17], %20 {strides = array<i32>} : memref<4x2x8x1xf32, #tpu.memory_space<vmem>>, vector<4x2x8x1xf32>,
      %cst_18 = arith.constant 0.000000e+00 : f32
      %22 = vector.broadcast %cst_18 : f32 to vector<4x2x8x1xf32>
      %c0_19 = arith.constant 0 : index
      %c0_20 = arith.constant 0 : index
      %c0_21 = arith.constant 0 : index
      %c0_22 = arith.constant 0 : index
      %23 = vector.load %arg14[%c0_19, %c0_20, %c0_21, %c0_22] : memref<4x2x8x1xf32, #tpu.memory_space<vmem>>, vector<4x2x8x1xf32>
      tpu.vector_store %arg14[%c0_19, %c0_20, %c0_21, %c0_22], %22 {strides = array<i32>} : memref<4x2x8x1xf32, #tpu.memory_space<vmem>>, vector<4x2x8x1xf32>,
      %cst_23 = arith.constant 0.000000e+00 : f32
      %24 = vector.broadcast %cst_23 : f32 to vector<2x8x32xf32>
      %c0_24 = arith.constant 0 : index
      %c0_25 = arith.constant 0 : index
      %c0_26 = arith.constant 0 : index
      %25 = vector.load %arg12[%c0_24, %c0_25, %c0_26] : memref<2x8x32xf32, #tpu.memory_space<vmem>>, vector<2x8x32xf32>
      tpu.vector_store %arg12[%c0_24, %c0_25, %c0_26], %24 {strides = array<i32>} : memref<2x8x32xf32, #tpu.memory_space<vmem>>, vector<2x8x32xf32>,
    } else {
    }
    %c7_i32 = arith.constant 7 : i32
    %5 = arith.addi %0, %c7_i32 : i32
    %6 = arith.cmpi sle, %1, %5 : i32
    %7 = arith.extui %6 : i1 to i32
    %c0_i32_2 = arith.constant 0 : i32
    %8 = arith.cmpi ne, %7, %c0_i32_2 : i32
    scf.if %8 {
      %c0 = arith.constant 0 : index
      %c0_5 = arith.constant 0 : index
      %c0_6 = arith.constant 0 : index
      %12 = vector.load %arg4[%c0, %c0_5, %c0_6] : memref<2x8x32xf32, #tpu.memory_space<vmem>>, vector<2x8x32xf32>
      %13 = vector.shape_cast %12 : vector<2x8x32xf32> to vector<16x32xf32>
      %c0_7 = arith.constant 0 : index
      %c0_8 = arith.constant 0 : index
      %14 = vector.load %arg6[%c0_7, %c0_8] : memref<32x32xf32, #tpu.memory_space<vmem>>, vector<32x32xf32>
      %cst = arith.constant dense<0.000000e+00> : vector<16x32xf32>
      %15 = tpu.matmul %13, %14, %cst {dimension_numbers = #tpu.dot_dimension_numbers<[1], [0], [0], [1], [0, 0, 1, 1], [], []>} : vector<16x32xf32>, vector<32x32xf32>, vector<16x32xf32> -> vector<16x32xf32>
      %c0_9 = arith.constant 0 : index
      %c0_10 = arith.constant 0 : index
      %16 = vector.load %arg7[%c0_9, %c0_10] : memref<32x32xf32, #tpu.memory_space<vmem>>, vector<32x32xf32>
      %cst_11 = arith.constant dense<0.000000e+00> : vector<16x32xf32>
      %17 = tpu.matmul %13, %16, %cst_11 {dimension_numbers = #tpu.dot_dimension_numbers<[1], [0], [0], [1], [0, 0, 1, 1], [], []>} : vector<16x32xf32>, vector<32x32xf32>, vector<16x32xf32> -> vector<16x32xf32>
      %18 = vector.shape_cast %15 : vector<16x32xf32> to vector<2x8x32xf32>
      %19 = vector.shape_cast %17 : vector<16x32xf32> to vector<2x8x32xf32>
      %20 = tpu.iota {dimensions = array<i32: 0>} : vector<8x8xi32>
      %21 = vector.broadcast %0 : i32 to vector<8x8xi32>
      %22 = arith.addi %21, %20 : vector<8x8xi32>
      %23 = tpu.iota {dimensions = array<i32: 1>} : vector<8x8xi32>
      %24 = vector.broadcast %1 : i32 to vector<8x8xi32>
      %25 = arith.addi %24, %23 : vector<8x8xi32>
      %26 = arith.cmpi sle, %25, %22 : vector<8x8xi32>
      %cst_12 = arith.constant 0.000000e+00 : f32
      %cst_13 = arith.constant -1.000000e+30 : f32
      %27 = vector.broadcast %cst_12 : f32 to vector<8x8xf32>
      %28 = vector.broadcast %cst_13 : f32 to vector<8x8xf32>
      %29 = arith.select %26, %27, %28 : vector<8x8xi1>, vector<8x8xf32>
      %30 = vector.shape_cast %29 : vector<8x8xf32> to vector<1x8x8xf32>
      %c0_14 = arith.constant 0 : index
      %c0_15 = arith.constant 0 : index
      %c0_16 = arith.constant 0 : index
      %31 = vector.load %arg11[%c0_14, %c0_15, %c0_16] : memref<2x8x32xf32, #tpu.memory_space<vmem>>, vector<2x8x8xf32>
      %32 = vector.extract_strided_slice %18 {offsets = [0, 0, 0], sizes = [2, 8, 8], strides = [1, 1, 1]} : vector<2x8x32xf32> to vector<2x8x8xf32>
      %33 = vector.extract_strided_slice %19 {offsets = [0, 0, 0], sizes = [2, 8, 8], strides = [1, 1, 1]} : vector<2x8x32xf32> to vector<2x8x8xf32>
      %cst_17 = arith.constant dense<0.000000e+00> : vector<2x8x8xf32>
      %34 = tpu.matmul %31, %32, %cst_17 {dimension_numbers = #tpu.dot_dimension_numbers<[2], [2], [1], [1], [0, 0, 0, 1, 1, 1], [0], [0]>} : vector<2x8x8xf32>, vector<2x8x8xf32>, vector<2x8x8xf32> -> vector<2x8x8xf32>
      %35 = vector.broadcast %30 : vector<1x8x8xf32> to vector<2x8x8xf32>
      %36 = arith.addf %34, %35 : vector<2x8x8xf32>
      %c0_18 = arith.constant 0 : index
      %c0_19 = arith.constant 0 : index
      %c0_20 = arith.constant 0 : index
      %c0_21 = arith.constant 0 : index
      %37 = vector.load %arg13[%c0_18, %c0_19, %c0_20, %c0_21] : memref<4x2x8x1xf32, #tpu.memory_space<vmem>>, vector<1x2x8x1xf32>
      %38 = vector.shape_cast %37 : vector<1x2x8x1xf32> to vector<2x8x1xf32>
      %cst_22 = arith.constant dense<0xFF800000> : vector<2x8xf32>
      %39 = vector.multi_reduction <maximumf>, %36, %cst_22 [2] : vector<2x8x8xf32> to vector<2x8xf32>
      %40 = vector.shape_cast %39 : vector<2x8xf32> to vector<2x8x1xf32>
      %41 = arith.maximumf %38, %40 : vector<2x8x1xf32>
      %42 = arith.subf %38, %41 : vector<2x8x1xf32>
      %43 = math.exp %42 : vector<2x8x1xf32>
      %44 = vector.broadcast %41 : vector<2x8x1xf32> to vector<2x8x8xf32>
      %45 = arith.subf %36, %44 : vector<2x8x8xf32>
      %46 = math.exp %45 : vector<2x8x8xf32>
      %c0_23 = arith.constant 0 : index
      %c0_24 = arith.constant 0 : index
      %c0_25 = arith.constant 0 : index
      %c0_26 = arith.constant 0 : index
      %47 = vector.load %arg14[%c0_23, %c0_24, %c0_25, %c0_26] : memref<4x2x8x1xf32, #tpu.memory_space<vmem>>, vector<1x2x8x1xf32>
      %48 = vector.shape_cast %47 : vector<1x2x8x1xf32> to vector<2x8x1xf32>
      %49 = arith.mulf %43, %48 : vector<2x8x1xf32>
      %cst_27 = arith.constant dense<0.000000e+00> : vector<2x8xf32>
      %50 = vector.multi_reduction <add>, %46, %cst_27 [2] : vector<2x8x8xf32> to vector<2x8xf32>
      %51 = vector.shape_cast %50 : vector<2x8xf32> to vector<2x8x1xf32>
      %52 = arith.addf %49, %51 : vector<2x8x1xf32>
      %c0_28 = arith.constant 0 : index
      %c0_29 = arith.constant 0 : index
      %c0_30 = arith.constant 0 : index
      %c0_31 = arith.constant 0 : index
      %53 = vector.load %arg14[%c0_28, %c0_29, %c0_30, %c0_31] : memref<4x2x8x1xf32, #tpu.memory_space<vmem>>, vector<1x2x8x1xf32>
      %54 = vector.shape_cast %53 : vector<1x2x8x1xf32> to vector<2x8x1xf32>
      %55 = vector.shape_cast %52 : vector<2x8x1xf32> to vector<1x2x8x1xf32>
      tpu.vector_store %arg14[%c0_28, %c0_29, %c0_30, %c0_31], %55 {strides = array<i32>} : memref<4x2x8x1xf32, #tpu.memory_space<vmem>>, vector<1x2x8x1xf32>,
      %cst_32 = arith.constant dense<0.000000e+00> : vector<2x8x8xf32>
      %56 = tpu.matmul %46, %33, %cst_32 {dimension_numbers = #tpu.dot_dimension_numbers<[2], [1], [1], [2], [0, 0, 0, 1, 1, 2], [0], [0]>} : vector<2x8x8xf32>, vector<2x8x8xf32>, vector<2x8x8xf32> -> vector<2x8x8xf32>
      %c0_33 = arith.constant 0 : index
      %c0_34 = arith.constant 0 : index
      %c0_35 = arith.constant 0 : index
      %57 = vector.load %arg12[%c0_33, %c0_34, %c0_35] : memref<2x8x32xf32, #tpu.memory_space<vmem>>, vector<2x8x8xf32>
      %58 = vector.broadcast %43 : vector<2x8x1xf32> to vector<2x8x8xf32>
      %59 = arith.mulf %58, %57 : vector<2x8x8xf32>
      %60 = arith.addf %59, %56 : vector<2x8x8xf32>
      %c0_36 = arith.constant 0 : index
      %c0_37 = arith.constant 0 : index
      %c0_38 = arith.constant 0 : index
      %61 = vector.load %arg12[%c0_36, %c0_37, %c0_38] : memref<2x8x32xf32, #tpu.memory_space<vmem>>, vector<2x8x8xf32>
      tpu.vector_store %arg12[%c0_36, %c0_37, %c0_38], %60 {strides = array<i32>} : memref<2x8x32xf32, #tpu.memory_space<vmem>>, vector<2x8x8xf32>,
      %c0_39 = arith.constant 0 : index
      %c0_40 = arith.constant 0 : index
      %c0_41 = arith.constant 0 : index
      %c0_42 = arith.constant 0 : index
      %62 = vector.load %arg13[%c0_39, %c0_40, %c0_41, %c0_42] : memref<4x2x8x1xf32, #tpu.memory_space<vmem>>, vector<1x2x8x1xf32>
      %63 = vector.shape_cast %62 : vector<1x2x8x1xf32> to vector<2x8x1xf32>
      %64 = vector.shape_cast %41 : vector<2x8x1xf32> to vector<1x2x8x1xf32>
      tpu.vector_store %arg13[%c0_39, %c0_40, %c0_41, %c0_42], %64 {strides = array<i32>} : memref<4x2x8x1xf32, #tpu.memory_space<vmem>>, vector<1x2x8x1xf32>,
      %c0_43 = arith.constant 0 : index
      %c0_44 = arith.constant 0 : index
      %c8 = arith.constant 8 : index
      %65 = vector.load %arg11[%c0_43, %c0_44, %c8] : memref<2x8x32xf32, #tpu.memory_space<vmem>>, vector<2x8x8xf32>
      %66 = vector.extract_strided_slice %18 {offsets = [0, 0, 8], sizes = [2, 8, 8], strides = [1, 1, 1]} : vector<2x8x32xf32> to vector<2x8x8xf32>
      %67 = vector.extract_strided_slice %19 {offsets = [0, 0, 8], sizes = [2, 8, 8], strides = [1, 1, 1]} : vector<2x8x32xf32> to vector<2x8x8xf32>
      %cst_45 = arith.constant dense<0.000000e+00> : vector<2x8x8xf32>
      %68 = tpu.matmul %65, %66, %cst_45 {dimension_numbers = #tpu.dot_dimension_numbers<[2], [2], [1], [1], [0, 0, 0, 1, 1, 1], [0], [0]>} : vector<2x8x8xf32>, vector<2x8x8xf32>, vector<2x8x8xf32> -> vector<2x8x8xf32>
      %69 = vector.broadcast %30 : vector<1x8x8xf32> to vector<2x8x8xf32>
      %70 = arith.addf %68, %69 : vector<2x8x8xf32>
      %c1 = arith.constant 1 : index
      %c0_46 = arith.constant 0 : index
      %c0_47 = arith.constant 0 : index
      %c0_48 = arith.constant 0 : index
      %71 = vector.load %arg13[%c1, %c0_46, %c0_47, %c0_48] : memref<4x2x8x1xf32, #tpu.memory_space<vmem>>, vector<1x2x8x1xf32>
      %72 = vector.shape_cast %71 : vector<1x2x8x1xf32> to vector<2x8x1xf32>
      %cst_49 = arith.constant dense<0xFF800000> : vector<2x8xf32>
      %73 = vector.multi_reduction <maximumf>, %70, %cst_49 [2] : vector<2x8x8xf32> to vector<2x8xf32>
      %74 = vector.shape_cast %73 : vector<2x8xf32> to vector<2x8x1xf32>
      %75 = arith.maximumf %72, %74 : vector<2x8x1xf32>
      %76 = arith.subf %72, %75 : vector<2x8x1xf32>
      %77 = math.exp %76 : vector<2x8x1xf32>
      %78 = vector.broadcast %75 : vector<2x8x1xf32> to vector<2x8x8xf32>
      %79 = arith.subf %70, %78 : vector<2x8x8xf32>
      %80 = math.exp %79 : vector<2x8x8xf32>
      %c1_50 = arith.constant 1 : index
      %c0_51 = arith.constant 0 : index
      %c0_52 = arith.constant 0 : index
      %c0_53 = arith.constant 0 : index
      %81 = vector.load %arg14[%c1_50, %c0_51, %c0_52, %c0_53] : memref<4x2x8x1xf32, #tpu.memory_space<vmem>>, vector<1x2x8x1xf32>
      %82 = vector.shape_cast %81 : vector<1x2x8x1xf32> to vector<2x8x1xf32>
      %83 = arith.mulf %77, %82 : vector<2x8x1xf32>
      %cst_54 = arith.constant dense<0.000000e+00> : vector<2x8xf32>
      %84 = vector.multi_reduction <add>, %80, %cst_54 [2] : vector<2x8x8xf32> to vector<2x8xf32>
      %85 = vector.shape_cast %84 : vector<2x8xf32> to vector<2x8x1xf32>
      %86 = arith.addf %83, %85 : vector<2x8x1xf32>
      %c1_55 = arith.constant 1 : index
      %c0_56 = arith.constant 0 : index
      %c0_57 = arith.constant 0 : index
      %c0_58 = arith.constant 0 : index
      %87 = vector.load %arg14[%c1_55, %c0_56, %c0_57, %c0_58] : memref<4x2x8x1xf32, #tpu.memory_space<vmem>>, vector<1x2x8x1xf32>
      %88 = vector.shape_cast %87 : vector<1x2x8x1xf32> to vector<2x8x1xf32>
      %89 = vector.shape_cast %86 : vector<2x8x1xf32> to vector<1x2x8x1xf32>
      tpu.vector_store %arg14[%c1_55, %c0_56, %c0_57, %c0_58], %89 {strides = array<i32>} : memref<4x2x8x1xf32, #tpu.memory_space<vmem>>, vector<1x2x8x1xf32>,
      %cst_59 = arith.constant dense<0.000000e+00> : vector<2x8x8xf32>
      %90 = tpu.matmul %80, %67, %cst_59 {dimension_numbers = #tpu.dot_dimension_numbers<[2], [1], [1], [2], [0, 0, 0, 1, 1, 2], [0], [0]>} : vector<2x8x8xf32>, vector<2x8x8xf32>, vector<2x8x8xf32> -> vector<2x8x8xf32>
      %c0_60 = arith.constant 0 : index
      %c0_61 = arith.constant 0 : index
      %c8_62 = arith.constant 8 : index
      %91 = vector.load %arg12[%c0_60, %c0_61, %c8_62] : memref<2x8x32xf32, #tpu.memory_space<vmem>>, vector<2x8x8xf32>
      %92 = vector.broadcast %77 : vector<2x8x1xf32> to vector<2x8x8xf32>
      %93 = arith.mulf %92, %91 : vector<2x8x8xf32>
      %94 = arith.addf %93, %90 : vector<2x8x8xf32>
      %c0_63 = arith.constant 0 : index
      %c0_64 = arith.constant 0 : index
      %c8_65 = arith.constant 8 : index
      %95 = vector.load %arg12[%c0_63, %c0_64, %c8_65] : memref<2x8x32xf32, #tpu.memory_space<vmem>>, vector<2x8x8xf32>
      tpu.vector_store %arg12[%c0_63, %c0_64, %c8_65], %94 {strides = array<i32>} : memref<2x8x32xf32, #tpu.memory_space<vmem>>, vector<2x8x8xf32>,
      %c1_66 = arith.constant 1 : index
      %c0_67 = arith.constant 0 : index
      %c0_68 = arith.constant 0 : index
      %c0_69 = arith.constant 0 : index
      %96 = vector.load %arg13[%c1_66, %c0_67, %c0_68, %c0_69] : memref<4x2x8x1xf32, #tpu.memory_space<vmem>>, vector<1x2x8x1xf32>
      %97 = vector.shape_cast %96 : vector<1x2x8x1xf32> to vector<2x8x1xf32>
      %98 = vector.shape_cast %75 : vector<2x8x1xf32> to vector<1x2x8x1xf32>
      tpu.vector_store %arg13[%c1_66, %c0_67, %c0_68, %c0_69], %98 {strides = array<i32>} : memref<4x2x8x1xf32, #tpu.memory_space<vmem>>, vector<1x2x8x1xf32>,
      %c0_70 = arith.constant 0 : index
      %c0_71 = arith.constant 0 : index
      %c16 = arith.constant 16 : index
      %99 = vector.load %arg11[%c0_70, %c0_71, %c16] : memref<2x8x32xf32, #tpu.memory_space<vmem>>, vector<2x8x8xf32>
      %100 = vector.extract_strided_slice %18 {offsets = [0, 0, 16], sizes = [2, 8, 8], strides = [1, 1, 1]} : vector<2x8x32xf32> to vector<2x8x8xf32>
      %101 = vector.extract_strided_slice %19 {offsets = [0, 0, 16], sizes = [2, 8, 8], strides = [1, 1, 1]} : vector<2x8x32xf32> to vector<2x8x8xf32>
      %cst_72 = arith.constant dense<0.000000e+00> : vector<2x8x8xf32>
      %102 = tpu.matmul %99, %100, %cst_72 {dimension_numbers = #tpu.dot_dimension_numbers<[2], [2], [1], [1], [0, 0, 0, 1, 1, 1], [0], [0]>} : vector<2x8x8xf32>, vector<2x8x8xf32>, vector<2x8x8xf32> -> vector<2x8x8xf32>
      %103 = vector.broadcast %30 : vector<1x8x8xf32> to vector<2x8x8xf32>
      %104 = arith.addf %102, %103 : vector<2x8x8xf32>
      %c2 = arith.constant 2 : index
      %c0_73 = arith.constant 0 : index
      %c0_74 = arith.constant 0 : index
      %c0_75 = arith.constant 0 : index
      %105 = vector.load %arg13[%c2, %c0_73, %c0_74, %c0_75] : memref<4x2x8x1xf32, #tpu.memory_space<vmem>>, vector<1x2x8x1xf32>
      %106 = vector.shape_cast %105 : vector<1x2x8x1xf32> to vector<2x8x1xf32>
      %cst_76 = arith.constant dense<0xFF800000> : vector<2x8xf32>
      %107 = vector.multi_reduction <maximumf>, %104, %cst_76 [2] : vector<2x8x8xf32> to vector<2x8xf32>
      %108 = vector.shape_cast %107 : vector<2x8xf32> to vector<2x8x1xf32>
      %109 = arith.maximumf %106, %108 : vector<2x8x1xf32>
      %110 = arith.subf %106, %109 : vector<2x8x1xf32>
      %111 = math.exp %110 : vector<2x8x1xf32>
      %112 = vector.broadcast %109 : vector<2x8x1xf32> to vector<2x8x8xf32>
      %113 = arith.subf %104, %112 : vector<2x8x8xf32>
      %114 = math.exp %113 : vector<2x8x8xf32>
      %c2_77 = arith.constant 2 : index
      %c0_78 = arith.constant 0 : index
      %c0_79 = arith.constant 0 : index
      %c0_80 = arith.constant 0 : index
      %115 = vector.load %arg14[%c2_77, %c0_78, %c0_79, %c0_80] : memref<4x2x8x1xf32, #tpu.memory_space<vmem>>, vector<1x2x8x1xf32>
      %116 = vector.shape_cast %115 : vector<1x2x8x1xf32> to vector<2x8x1xf32>
      %117 = arith.mulf %111, %116 : vector<2x8x1xf32>
      %cst_81 = arith.constant dense<0.000000e+00> : vector<2x8xf32>
      %118 = vector.multi_reduction <add>, %114, %cst_81 [2] : vector<2x8x8xf32> to vector<2x8xf32>
      %119 = vector.shape_cast %118 : vector<2x8xf32> to vector<2x8x1xf32>
      %120 = arith.addf %117, %119 : vector<2x8x1xf32>
      %c2_82 = arith.constant 2 : index
      %c0_83 = arith.constant 0 : index
      %c0_84 = arith.constant 0 : index
      %c0_85 = arith.constant 0 : index
      %121 = vector.load %arg14[%c2_82, %c0_83, %c0_84, %c0_85] : memref<4x2x8x1xf32, #tpu.memory_space<vmem>>, vector<1x2x8x1xf32>
      %122 = vector.shape_cast %121 : vector<1x2x8x1xf32> to vector<2x8x1xf32>
      %123 = vector.shape_cast %120 : vector<2x8x1xf32> to vector<1x2x8x1xf32>
      tpu.vector_store %arg14[%c2_82, %c0_83, %c0_84, %c0_85], %123 {strides = array<i32>} : memref<4x2x8x1xf32, #tpu.memory_space<vmem>>, vector<1x2x8x1xf32>,
      %cst_86 = arith.constant dense<0.000000e+00> : vector<2x8x8xf32>
      %124 = tpu.matmul %114, %101, %cst_86 {dimension_numbers = #tpu.dot_dimension_numbers<[2], [1], [1], [2], [0, 0, 0, 1, 1, 2], [0], [0]>} : vector<2x8x8xf32>, vector<2x8x8xf32>, vector<2x8x8xf32> -> vector<2x8x8xf32>
      %c0_87 = arith.constant 0 : index
      %c0_88 = arith.constant 0 : index
      %c16_89 = arith.constant 16 : index
      %125 = vector.load %arg12[%c0_87, %c0_88, %c16_89] : memref<2x8x32xf32, #tpu.memory_space<vmem>>, vector<2x8x8xf32>
      %126 = vector.broadcast %111 : vector<2x8x1xf32> to vector<2x8x8xf32>
      %127 = arith.mulf %126, %125 : vector<2x8x8xf32>
      %128 = arith.addf %127, %124 : vector<2x8x8xf32>
      %c0_90 = arith.constant 0 : index
      %c0_91 = arith.constant 0 : index
      %c16_92 = arith.constant 16 : index
      %129 = vector.load %arg12[%c0_90, %c0_91, %c16_92] : memref<2x8x32xf32, #tpu.memory_space<vmem>>, vector<2x8x8xf32>
      tpu.vector_store %arg12[%c0_90, %c0_91, %c16_92], %128 {strides = array<i32>} : memref<2x8x32xf32, #tpu.memory_space<vmem>>, vector<2x8x8xf32>,
      %c2_93 = arith.constant 2 : index
      %c0_94 = arith.constant 0 : index
      %c0_95 = arith.constant 0 : index
      %c0_96 = arith.constant 0 : index
      %130 = vector.load %arg13[%c2_93, %c0_94, %c0_95, %c0_96] : memref<4x2x8x1xf32, #tpu.memory_space<vmem>>, vector<1x2x8x1xf32>
      %131 = vector.shape_cast %130 : vector<1x2x8x1xf32> to vector<2x8x1xf32>
      %132 = vector.shape_cast %109 : vector<2x8x1xf32> to vector<1x2x8x1xf32>
      tpu.vector_store %arg13[%c2_93, %c0_94, %c0_95, %c0_96], %132 {strides = array<i32>} : memref<4x2x8x1xf32, #tpu.memory_space<vmem>>, vector<1x2x8x1xf32>,
      %c0_97 = arith.constant 0 : index
      %c0_98 = arith.constant 0 : index
      %c24 = arith.constant 24 : index
      %133 = vector.load %arg11[%c0_97, %c0_98, %c24] : memref<2x8x32xf32, #tpu.memory_space<vmem>>, vector<2x8x8xf32>
      %134 = vector.extract_strided_slice %18 {offsets = [0, 0, 24], sizes = [2, 8, 8], strides = [1, 1, 1]} : vector<2x8x32xf32> to vector<2x8x8xf32>
      %135 = vector.extract_strided_slice %19 {offsets = [0, 0, 24], sizes = [2, 8, 8], strides = [1, 1, 1]} : vector<2x8x32xf32> to vector<2x8x8xf32>
      %cst_99 = arith.constant dense<0.000000e+00> : vector<2x8x8xf32>
      %136 = tpu.matmul %133, %134, %cst_99 {dimension_numbers = #tpu.dot_dimension_numbers<[2], [2], [1], [1], [0, 0, 0, 1, 1, 1], [0], [0]>} : vector<2x8x8xf32>, vector<2x8x8xf32>, vector<2x8x8xf32> -> vector<2x8x8xf32>
      %137 = vector.broadcast %30 : vector<1x8x8xf32> to vector<2x8x8xf32>
      %138 = arith.addf %136, %137 : vector<2x8x8xf32>
      %c3 = arith.constant 3 : index
      %c0_100 = arith.constant 0 : index
      %c0_101 = arith.constant 0 : index
      %c0_102 = arith.constant 0 : index
      %139 = vector.load %arg13[%c3, %c0_100, %c0_101, %c0_102] : memref<4x2x8x1xf32, #tpu.memory_space<vmem>>, vector<1x2x8x1xf32>
      %140 = vector.shape_cast %139 : vector<1x2x8x1xf32> to vector<2x8x1xf32>
      %cst_103 = arith.constant dense<0xFF800000> : vector<2x8xf32>
      %141 = vector.multi_reduction <maximumf>, %138, %cst_103 [2] : vector<2x8x8xf32> to vector<2x8xf32>
      %142 = vector.shape_cast %141 : vector<2x8xf32> to vector<2x8x1xf32>
      %143 = arith.maximumf %140, %142 : vector<2x8x1xf32>
      %144 = arith.subf %140, %143 : vector<2x8x1xf32>
      %145 = math.exp %144 : vector<2x8x1xf32>
      %146 = vector.broadcast %143 : vector<2x8x1xf32> to vector<2x8x8xf32>
      %147 = arith.subf %138, %146 : vector<2x8x8xf32>
      %148 = math.exp %147 : vector<2x8x8xf32>
      %c3_104 = arith.constant 3 : index
      %c0_105 = arith.constant 0 : index
      %c0_106 = arith.constant 0 : index
      %c0_107 = arith.constant 0 : index
      %149 = vector.load %arg14[%c3_104, %c0_105, %c0_106, %c0_107] : memref<4x2x8x1xf32, #tpu.memory_space<vmem>>, vector<1x2x8x1xf32>
      %150 = vector.shape_cast %149 : vector<1x2x8x1xf32> to vector<2x8x1xf32>
      %151 = arith.mulf %145, %150 : vector<2x8x1xf32>
      %cst_108 = arith.constant dense<0.000000e+00> : vector<2x8xf32>
      %152 = vector.multi_reduction <add>, %148, %cst_108 [2] : vector<2x8x8xf32> to vector<2x8xf32>
      %153 = vector.shape_cast %152 : vector<2x8xf32> to vector<2x8x1xf32>
      %154 = arith.addf %151, %153 : vector<2x8x1xf32>
      %c3_109 = arith.constant 3 : index
      %c0_110 = arith.constant 0 : index
      %c0_111 = arith.constant 0 : index
      %c0_112 = arith.constant 0 : index
      %155 = vector.load %arg14[%c3_109, %c0_110, %c0_111, %c0_112] : memref<4x2x8x1xf32, #tpu.memory_space<vmem>>, vector<1x2x8x1xf32>
      %156 = vector.shape_cast %155 : vector<1x2x8x1xf32> to vector<2x8x1xf32>
      %157 = vector.shape_cast %154 : vector<2x8x1xf32> to vector<1x2x8x1xf32>
      tpu.vector_store %arg14[%c3_109, %c0_110, %c0_111, %c0_112], %157 {strides = array<i32>} : memref<4x2x8x1xf32, #tpu.memory_space<vmem>>, vector<1x2x8x1xf32>,
      %cst_113 = arith.constant dense<0.000000e+00> : vector<2x8x8xf32>
      %158 = tpu.matmul %148, %135, %cst_113 {dimension_numbers = #tpu.dot_dimension_numbers<[2], [1], [1], [2], [0, 0, 0, 1, 1, 2], [0], [0]>} : vector<2x8x8xf32>, vector<2x8x8xf32>, vector<2x8x8xf32> -> vector<2x8x8xf32>
      %c0_114 = arith.constant 0 : index
      %c0_115 = arith.constant 0 : index
      %c24_116 = arith.constant 24 : index
      %159 = vector.load %arg12[%c0_114, %c0_115, %c24_116] : memref<2x8x32xf32, #tpu.memory_space<vmem>>, vector<2x8x8xf32>
      %160 = vector.broadcast %145 : vector<2x8x1xf32> to vector<2x8x8xf32>
      %161 = arith.mulf %160, %159 : vector<2x8x8xf32>
      %162 = arith.addf %161, %158 : vector<2x8x8xf32>
      %c0_117 = arith.constant 0 : index
      %c0_118 = arith.constant 0 : index
      %c24_119 = arith.constant 24 : index
      %163 = vector.load %arg12[%c0_117, %c0_118, %c24_119] : memref<2x8x32xf32, #tpu.memory_space<vmem>>, vector<2x8x8xf32>
      tpu.vector_store %arg12[%c0_117, %c0_118, %c24_119], %162 {strides = array<i32>} : memref<2x8x32xf32, #tpu.memory_space<vmem>>, vector<2x8x8xf32>,
      %c3_120 = arith.constant 3 : index
      %c0_121 = arith.constant 0 : index
      %c0_122 = arith.constant 0 : index
      %c0_123 = arith.constant 0 : index
      %164 = vector.load %arg13[%c3_120, %c0_121, %c0_122, %c0_123] : memref<4x2x8x1xf32, #tpu.memory_space<vmem>>, vector<1x2x8x1xf32>
      %165 = vector.shape_cast %164 : vector<1x2x8x1xf32> to vector<2x8x1xf32>
      %166 = vector.shape_cast %143 : vector<2x8x1xf32> to vector<1x2x8x1xf32>
      tpu.vector_store %arg13[%c3_120, %c0_121, %c0_122, %c0_123], %166 {strides = array<i32>} : memref<4x2x8x1xf32, #tpu.memory_space<vmem>>, vector<1x2x8x1xf32>,
    } else {
    }
    %c0_i32_3 = arith.constant 0 : i32
    %9 = arith.cmpi eq, %arg2, %c0_i32_3 : i32
    %10 = arith.extui %9 : i1 to i32
    %c0_i32_4 = arith.constant 0 : i32
    %11 = arith.cmpi ne, %10, %c0_i32_4 : i32
    scf.if %11 {
      %c0 = arith.constant 0 : index
      %c0_5 = arith.constant 0 : index
      %c0_6 = arith.constant 0 : index
      %c0_7 = arith.constant 0 : index
      %12 = vector.load %arg14[%c0, %c0_5, %c0_6, %c0_7] : memref<4x2x8x1xf32, #tpu.memory_space<vmem>>, vector<1x2x8x1xf32>
      %13 = vector.shape_cast %12 : vector<1x2x8x1xf32> to vector<2x8x1xf32>
      %14 = tpu.reciprocal %13 : vector<2x8x1xf32> -> vector<2x8x1xf32>
      %c0_8 = arith.constant 0 : index
      %c0_9 = arith.constant 0 : index
      %c0_10 = arith.constant 0 : index
      %15 = vector.load %arg12[%c0_8, %c0_9, %c0_10] : memref<2x8x32xf32, #tpu.memory_space<vmem>>, vector<2x8x8xf32>
      %16 = vector.broadcast %14 : vector<2x8x1xf32> to vector<2x8x8xf32>
      %17 = arith.mulf %15, %16 : vector<2x8x8xf32>
      %c0_11 = arith.constant 0 : index
      %c0_12 = arith.constant 0 : index
      %c0_13 = arith.constant 0 : index
      %18 = vector.load %arg12[%c0_11, %c0_12, %c0_13] : memref<2x8x32xf32, #tpu.memory_space<vmem>>, vector<2x8x8xf32>
      tpu.vector_store %arg12[%c0_11, %c0_12, %c0_13], %17 {strides = array<i32>} : memref<2x8x32xf32, #tpu.memory_space<vmem>>, vector<2x8x8xf32>,
      %c1 = arith.constant 1 : index
      %c0_14 = arith.constant 0 : index
      %c0_15 = arith.constant 0 : index
      %c0_16 = arith.constant 0 : index
      %19 = vector.load %arg14[%c1, %c0_14, %c0_15, %c0_16] : memref<4x2x8x1xf32, #tpu.memory_space<vmem>>, vector<1x2x8x1xf32>
      %20 = vector.shape_cast %19 : vector<1x2x8x1xf32> to vector<2x8x1xf32>
      %21 = tpu.reciprocal %20 : vector<2x8x1xf32> -> vector<2x8x1xf32>
      %c0_17 = arith.constant 0 : index
      %c0_18 = arith.constant 0 : index
      %c8 = arith.constant 8 : index
      %22 = vector.load %arg12[%c0_17, %c0_18, %c8] : memref<2x8x32xf32, #tpu.memory_space<vmem>>, vector<2x8x8xf32>
      %23 = vector.broadcast %21 : vector<2x8x1xf32> to vector<2x8x8xf32>
      %24 = arith.mulf %22, %23 : vector<2x8x8xf32>
      %c0_19 = arith.constant 0 : index
      %c0_20 = arith.constant 0 : index
      %c8_21 = arith.constant 8 : index
      %25 = vector.load %arg12[%c0_19, %c0_20, %c8_21] : memref<2x8x32xf32, #tpu.memory_space<vmem>>, vector<2x8x8xf32>
      tpu.vector_store %arg12[%c0_19, %c0_20, %c8_21], %24 {strides = array<i32>} : memref<2x8x32xf32, #tpu.memory_space<vmem>>, vector<2x8x8xf32>,
      %c2 = arith.constant 2 : index
      %c0_22 = arith.constant 0 : index
      %c0_23 = arith.constant 0 : index
      %c0_24 = arith.constant 0 : index
      %26 = vector.load %arg14[%c2, %c0_22, %c0_23, %c0_24] : memref<4x2x8x1xf32, #tpu.memory_space<vmem>>, vector<1x2x8x1xf32>
      %27 = vector.shape_cast %26 : vector<1x2x8x1xf32> to vector<2x8x1xf32>
      %28 = tpu.reciprocal %27 : vector<2x8x1xf32> -> vector<2x8x1xf32>
      %c0_25 = arith.constant 0 : index
      %c0_26 = arith.constant 0 : index
      %c16 = arith.constant 16 : index
      %29 = vector.load %arg12[%c0_25, %c0_26, %c16] : memref<2x8x32xf32, #tpu.memory_space<vmem>>, vector<2x8x8xf32>
      %30 = vector.broadcast %28 : vector<2x8x1xf32> to vector<2x8x8xf32>
      %31 = arith.mulf %29, %30 : vector<2x8x8xf32>
      %c0_27 = arith.constant 0 : index
      %c0_28 = arith.constant 0 : index
      %c16_29 = arith.constant 16 : index
      %32 = vector.load %arg12[%c0_27, %c0_28, %c16_29] : memref<2x8x32xf32, #tpu.memory_space<vmem>>, vector<2x8x8xf32>
      tpu.vector_store %arg12[%c0_27, %c0_28, %c16_29], %31 {strides = array<i32>} : memref<2x8x32xf32, #tpu.memory_space<vmem>>, vector<2x8x8xf32>,
      %c3 = arith.constant 3 : index
      %c0_30 = arith.constant 0 : index
      %c0_31 = arith.constant 0 : index
      %c0_32 = arith.constant 0 : index
      %33 = vector.load %arg14[%c3, %c0_30, %c0_31, %c0_32] : memref<4x2x8x1xf32, #tpu.memory_space<vmem>>, vector<1x2x8x1xf32>
      %34 = vector.shape_cast %33 : vector<1x2x8x1xf32> to vector<2x8x1xf32>
      %35 = tpu.reciprocal %34 : vector<2x8x1xf32> -> vector<2x8x1xf32>
      %c0_33 = arith.constant 0 : index
      %c0_34 = arith.constant 0 : index
      %c24 = arith.constant 24 : index
      %36 = vector.load %arg12[%c0_33, %c0_34, %c24] : memref<2x8x32xf32, #tpu.memory_space<vmem>>, vector<2x8x8xf32>
      %37 = vector.broadcast %35 : vector<2x8x1xf32> to vector<2x8x8xf32>
      %38 = arith.mulf %36, %37 : vector<2x8x8xf32>
      %c0_35 = arith.constant 0 : index
      %c0_36 = arith.constant 0 : index
      %c24_37 = arith.constant 24 : index
      %39 = vector.load %arg12[%c0_35, %c0_36, %c24_37] : memref<2x8x32xf32, #tpu.memory_space<vmem>>, vector<2x8x8xf32>
      tpu.vector_store %arg12[%c0_35, %c0_36, %c24_37], %38 {strides = array<i32>} : memref<2x8x32xf32, #tpu.memory_space<vmem>>, vector<2x8x8xf32>,
      %c0_38 = arith.constant 0 : index
      %c0_39 = arith.constant 0 : index
      %c0_40 = arith.constant 0 : index
      %40 = vector.load %arg12[%c0_38, %c0_39, %c0_40] : memref<2x8x32xf32, #tpu.memory_space<vmem>>, vector<2x8x32xf32>
      %41 = vector.shape_cast %40 : vector<2x8x32xf32> to vector<16x32xf32>
      %c0_41 = arith.constant 0 : index
      %c0_42 = arith.constant 0 : index
      %42 = vector.load %arg8[%c0_41, %c0_42] : memref<32x32xf32, #tpu.memory_space<vmem>>, vector<32x32xf32>
      %cst = arith.constant dense<0.000000e+00> : vector<16x32xf32>
      %43 = tpu.matmul %41, %42, %cst {dimension_numbers = #tpu.dot_dimension_numbers<[1], [0], [0], [1], [0, 0, 1, 1], [], []>} : vector<16x32xf32>, vector<32x32xf32>, vector<16x32xf32> -> vector<16x32xf32>
      %c0_43 = arith.constant 0 : index
      %c0_44 = arith.constant 0 : index
      %44 = vector.load %arg9[%c0_43, %c0_44] : memref<1x32xf32, #tpu.memory_space<vmem>>, vector<1x32xf32>
      %45 = vector.broadcast %44 : vector<1x32xf32> to vector<16x32xf32>
      %46 = arith.addf %43, %45 : vector<16x32xf32>
      %47 = vector.shape_cast %46 : vector<16x32xf32> to vector<2x8x32xf32>
      %c0_45 = arith.constant 0 : index
      %c0_46 = arith.constant 0 : index
      %c0_47 = arith.constant 0 : index
      %48 = vector.load %arg10[%c0_45, %c0_46, %c0_47] : memref<2x8x32xf32, #tpu.memory_space<vmem>>, vector<2x8x32xf32>
      tpu.vector_store %arg10[%c0_45, %c0_46, %c0_47], %47 {strides = array<i32>} : memref<2x8x32xf32, #tpu.memory_space<vmem>>, vector<2x8x32xf32>,
    } else {
    }
    return
  }
  func.func @transform_0(%arg0: i32, %arg1: i32, %arg2: i32) -> (i32, i32, i32) {
    %c0_i32 = arith.constant 0 : i32
    %c0_i32_0 = arith.constant 0 : i32
    return %arg0, %arg1, %c0_i32 : i32, i32, i32
  }
  func.func @transform_1(%arg0: i32, %arg1: i32, %arg2: i32) -> (i32, i32, i32) {
    %c0_i32 = arith.constant 0 : i32
    %c0_i32_0 = arith.constant 0 : i32
    return %arg0, %arg2, %c0_i32 : i32, i32, i32
  }
  func.func @transform_2(%arg0: i32, %arg1: i32, %arg2: i32) -> (i32, i32) {
    %c0_i32 = arith.constant 0 : i32
    %c0_i32_0 = arith.constant 0 : i32
    %c0_i32_1 = arith.constant 0 : i32
    return %c0_i32, %c0_i32_0 : i32, i32
  }
  func.func @transform_3(%arg0: i32, %arg1: i32, %arg2: i32) -> (i32, i32) {
    %c0_i32 = arith.constant 0 : i32
    %c0_i32_0 = arith.constant 0 : i32
    %c0_i32_1 = arith.constant 0 : i32
    return %c0_i32, %c0_i32_0 : i32, i32
  }
  func.func @transform_4(%arg0: i32, %arg1: i32, %arg2: i32) -> (i32, i32) {
    %c0_i32 = arith.constant 0 : i32
    %c0_i32_0 = arith.constant 0 : i32
    %c0_i32_1 = arith.constant 0 : i32
    return %c0_i32, %c0_i32_0 : i32, i32
  }
  func.func @transform_5(%arg0: i32, %arg1: i32, %arg2: i32) -> (i32, i32) {
    %c0_i32 = arith.constant 0 : i32
    %c0_i32_0 = arith.constant 0 : i32
    %c0_i32_1 = arith.constant 0 : i32
    return %c0_i32, %c0_i32_0 : i32, i32
  }
  func.func @transform_6(%arg0: i32, %arg1: i32, %arg2: i32) -> (i32, i32) {
    %c0_i32 = arith.constant 0 : i32
    %c0_i32_0 = arith.constant 0 : i32
    %c0_i32_1 = arith.constant 0 : i32
    return %c0_i32, %c0_i32_0 : i32, i32
  }
  func.func @transform_7(%arg0: i32, %arg1: i32, %arg2: i32) -> (i32, i32, i32) {
    %c0_i32 = arith.constant 0 : i32
    %c0_i32_0 = arith.constant 0 : i32
    return %arg0, %arg1, %c0_i32 : i32, i32, i32
  }
}

</mosaic_0001>

<llo_original>
// kernel: tpu_custom_call.1
$region0: #{tpu_custom_call.1}
  #allocation0 [shape = 'u32[]', space=smem, size = 0x4, offset = 0x4, fixed_abs, tag = 'smem constant byte address 0x4 - core index']
  #allocation1 [shape = 'u32[144,128]{1,0:T(1,128)}', space=vmem, size = 0x12000, scoped, tag = 'internal scratch']
  #allocation2 [shape = 'f32[2,8,32]{2,1,0:T(8,128)}', space=vmem, size = 0x2000, scoped, tag = 'scratch operand']
  #allocation3 [shape = 'f32[2,8,32]{2,1,0:T(8,128)}', space=vmem, size = 0x2000, scoped, tag = 'scratch operand']
  #allocation4 [shape = 'f32[4,2,8,1]{3,2,1,0:T(8,128)}', space=vmem, size = 0x8000, scoped, tag = 'scratch operand']
  #allocation5 [shape = 'f32[4,2,8,1]{3,2,1,0:T(8,128)}', space=vmem, size = 0x8000, scoped, tag = 'scratch operand']
  %s0 = inlined_call_operand.hbm [shape: f32[2,8,32], index: 0, kind: input, shape index: {}]
  %s1 = inlined_call_operand.hbm [shape: f32[2,8,32], index: 1, kind: input, shape index: {}]
  %s2 = inlined_call_operand.hbm [shape: f32[32,32], index: 2, kind: input, shape index: {}]
  %s3 = inlined_call_operand.hbm [shape: f32[32,32], index: 3, kind: input, shape index: {}]
  %s4 = inlined_call_operand.hbm [shape: f32[32,32], index: 4, kind: input, shape index: {}]
  %s5 = inlined_call_operand.hbm [shape: f32[32,32], index: 5, kind: input, shape index: {}]
  %s6 = inlined_call_operand.hbm [shape: f32[1,32], index: 6, kind: input, shape index: {}]
  %s7 = inlined_call_operand.hbm [shape: f32[2,8,32], index: 7, kind: output, shape index: {}]
  %s8 = sld [smem:[#allocation0]]
  $region78: #{tpu_custom_call.1} parent=0
    _
  %s10 = ssub.s32 1, %s8
  %s11 = scalar_select 0, %s10, %s8
  $region1: #{tpu_custom_call.1} parent=0
    #allocation6 [shape = 'u8[8192]{0}', space=vmem, size = 0x2000, scoped, tag = 'input window, operand 0, single buffered']
    #allocation7 [shape = 's32[1]{0}', space=sflag, size = 0x4, scoped, tag = 'scoped memory for tpu_custom_call.1']
    #allocation8 [shape = 's32[1]{0}', space=sflag, size = 0x4, scoped, tag = 'scoped memory for tpu_custom_call.1']
    #allocation9 [shape = 'u8[8192]{0}', space=vmem, size = 0x2000, scoped, tag = 'input window, operand 1, single buffered']
    #allocation10 [shape = 's32[1]{0}', space=sflag, size = 0x4, scoped, tag = 'scoped memory for tpu_custom_call.1']
    #allocation11 [shape = 'u8[16384]{0}', space=vmem, size = 0x4000, scoped, tag = 'input window, operand 2, single buffered']
    #allocation12 [shape = 'u8[16384]{0}', space=vmem, size = 0x4000, scoped, tag = 'input window, operand 3, single buffered']
    #allocation13 [shape = 's32[1]{0}', space=sflag, size = 0x4, scoped, tag = 'scoped memory for tpu_custom_call.1']
    #allocation14 [shape = 'u8[16384]{0}', space=vmem, size = 0x4000, scoped, tag = 'input window, operand 4, single buffered']
    #allocation15 [shape = 'u8[16384]{0}', space=vmem, size = 0x4000, scoped, tag = 'input window, operand 5, single buffered']
    #allocation16 [shape = 's32[1]{0}', space=sflag, size = 0x4, scoped, tag = 'scoped memory for tpu_custom_call.1']
    #allocation17 [shape = 'u8[512]{0}', space=vmem, size = 0x400, scoped, tag = 'input window, operand 6, single buffered']
    #allocation18 [shape = 'u8[8192]{0}', space=vmem, size = 0x2000, scoped, tag = 'output window, operand 0, single buffered']
    %12 = vsyncpa [#allocation7], 0
    %13 = vsyncpa [#allocation10], 0
    %14 = vsyncpa [#allocation13], 0
    %15 = vsyncpa [#allocation16], 0
    %16 = vsyncpa [#allocation8], 0
    // Predicated region
    $region2: #{tpu_custom_call.1} parent=1 // pred_check
      _
    $region3: #{tpu_custom_call.1} parent=1 // pred_check_branch
      %18 = sbr.rel (0) target = $region5
    $region4: #{tpu_custom_call.1} parent=1 // pred_region
      %s20 = ssub.s32 256, 256
      %21 = vsyncadd [#allocation7], %s20
      %s22 = sshll.u32 [#allocation6], 4
      %s23 = int_to_ptr.vmem [resolvable:$true] %s22
      %28 = dma.hbm_to_vmem [thread:$0]  %s0, 256, %s23, [#allocation7], 128, 128, 8
    $region5: #{tpu_custom_call.1} parent=1 // pred_fallthru
      _
    // Predicated region
    $region6: #{tpu_custom_call.1} parent=1 // pred_check
      _
    $region7: #{tpu_custom_call.1} parent=1 // pred_check_branch
      %30 = sbr.rel (0) target = $region9
    $region8: #{tpu_custom_call.1} parent=1 // pred_region
      %s32 = ssub.s32 256, 256
      %33 = vsyncadd [#allocation10], %s32
      %s34 = sshll.u32 [#allocation9], 4
      %s35 = int_to_ptr.vmem [resolvable:$true] %s34
      %40 = dma.hbm_to_vmem [thread:$0]  %s1, 256, %s35, [#allocation10], 128, 128, 8
    $region9: #{tpu_custom_call.1} parent=1 // pred_fallthru
      _
    // Predicated region
    $region10: #{tpu_custom_call.1} parent=1 // pred_check
      _
    $region11: #{tpu_custom_call.1} parent=1 // pred_check_branch
      %42 = sbr.rel (0) target = $region13
    $region12: #{tpu_custom_call.1} parent=1 // pred_region
      %s44 = ssub.s32 512, 512
      %45 = vsyncadd [#allocation10], %s44
      %s46 = sshll.u32 [#allocation11], 4
      %s47 = int_to_ptr.vmem [resolvable:$true] %s46
      %52 = dma.hbm_to_vmem [thread:$0]  %s2, 512, %s47, [#allocation10], 128, 128, 8
    $region13: #{tpu_custom_call.1} parent=1 // pred_fallthru
      _
    // Predicated region
    $region14: #{tpu_custom_call.1} parent=1 // pred_check
      _
    $region15: #{tpu_custom_call.1} parent=1 // pred_check_branch
      %54 = sbr.rel (0) target = $region17
    $region16: #{tpu_custom_call.1} parent=1 // pred_region
      %s56 = ssub.s32 512, 512
      %57 = vsyncadd [#allocation13], %s56
      %s58 = sshll.u32 [#allocation12], 4
      %s59 = int_to_ptr.vmem [resolvable:$true] %s58
      %64 = dma.hbm_to_vmem [thread:$0]  %s3, 512, %s59, [#allocation13], 128, 128, 8
    $region17: #{tpu_custom_call.1} parent=1 // pred_fallthru
      _
    // Predicated region
    $region18: #{tpu_custom_call.1} parent=1 // pred_check
      _
    $region19: #{tpu_custom_call.1} parent=1 // pred_check_branch
      %66 = sbr.rel (0) target = $region21
    $region20: #{tpu_custom_call.1} parent=1 // pred_region
      %s68 = ssub.s32 512, 512
      %69 = vsyncadd [#allocation13], %s68
      %s70 = sshll.u32 [#allocation14], 4
      %s71 = int_to_ptr.vmem [resolvable:$true] %s70
      %76 = dma.hbm_to_vmem [thread:$0]  %s4, 512, %s71, [#allocation13], 128, 128, 8
    $region21: #{tpu_custom_call.1} parent=1 // pred_fallthru
      _
    // Predicated region
    $region22: #{tpu_custom_call.1} parent=1 // pred_check
      _
    $region23: #{tpu_custom_call.1} parent=1 // pred_check_branch
      %78 = sbr.rel (0) target = $region25
    $region24: #{tpu_custom_call.1} parent=1 // pred_region
      %s80 = ssub.s32 512, 512
      %81 = vsyncadd [#allocation16], %s80
      %s82 = sshll.u32 [#allocation15], 4
      %s83 = int_to_ptr.vmem [resolvable:$true] %s82
      %88 = dma.hbm_to_vmem [thread:$0]  %s5, 512, %s83, [#allocation16], 128, 128, 8
    $region25: #{tpu_custom_call.1} parent=1 // pred_fallthru
      _
    // Predicated region
    $region26: #{tpu_custom_call.1} parent=1 // pred_check
      _
    $region27: #{tpu_custom_call.1} parent=1 // pred_check_branch
      %90 = sbr.rel (0) target = $region29
    $region28: #{tpu_custom_call.1} parent=1 // pred_region
      %s92 = ssub.s32 16, 16
      %93 = vsyncadd [#allocation16], %s92
      %s95 = sshll.u32 [#allocation17], 4
      %s96 = int_to_ptr.vmem [resolvable:$true] %s95
      %98 = dma.hbm_to_vmem [thread:$0]  %s6, 16, %s96, [#allocation16]
    $region29: #{tpu_custom_call.1} parent=1 // pred_fallthru
      _
    // Predicated region
    $region30: #{tpu_custom_call.1} parent=1 // pred_check
      _
    $region31: #{tpu_custom_call.1} parent=1 // pred_check_branch
      %100 = sbr.rel (0) target = $region33
    $region32: #{tpu_custom_call.1} parent=1 // pred_region
      %101 = dma.done [#allocation7], 256
    $region33: #{tpu_custom_call.1} parent=1 // pred_fallthru
      _
    // Predicated region
    $region34: #{tpu_custom_call.1} parent=1 // pred_check
      _
    $region35: #{tpu_custom_call.1} parent=1 // pred_check_branch
      %103 = sbr.rel (0) target = $region37
    $region36: #{tpu_custom_call.1} parent=1 // pred_region
      %104 = dma.done [#allocation10], 256
    $region37: #{tpu_custom_call.1} parent=1 // pred_fallthru
      _
    // Predicated region
    $region38: #{tpu_custom_call.1} parent=1 // pred_check
      _
    $region39: #{tpu_custom_call.1} parent=1 // pred_check_branch
      %106 = sbr.rel (0) target = $region41
    $region40: #{tpu_custom_call.1} parent=1 // pred_region
      %107 = dma.done [#allocation10], 512
    $region41: #{tpu_custom_call.1} parent=1 // pred_fallthru
      _
    // Predicated region
    $region42: #{tpu_custom_call.1} parent=1 // pred_check
      _
    $region43: #{tpu_custom_call.1} parent=1 // pred_check_branch
      %109 = sbr.rel (0) target = $region45
    $region44: #{tpu_custom_call.1} parent=1 // pred_region
      %110 = dma.done [#allocation13], 512
    $region45: #{tpu_custom_call.1} parent=1 // pred_fallthru
      _
    // Predicated region
    $region46: #{tpu_custom_call.1} parent=1 // pred_check
      _
    $region47: #{tpu_custom_call.1} parent=1 // pred_check_branch
      %112 = sbr.rel (0) target = $region49
    $region48: #{tpu_custom_call.1} parent=1 // pred_region
      %113 = dma.done [#allocation13], 512
    $region49: #{tpu_custom_call.1} parent=1 // pred_fallthru
      _
    // Predicated region
    $region50: #{tpu_custom_call.1} parent=1 // pred_check
      _
    $region51: #{tpu_custom_call.1} parent=1 // pred_check_branch
      %115 = sbr.rel (0) target = $region53
    $region52: #{tpu_custom_call.1} parent=1 // pred_region
      %116 = dma.done [#allocation16], 512
    $region53: #{tpu_custom_call.1} parent=1 // pred_fallthru
      _
    // Predicated region
    $region54: #{tpu_custom_call.1} parent=1 // pred_check
      _
    $region55: #{tpu_custom_call.1} parent=1 // pred_check_branch
      %118 = sbr.rel (0) target = $region57
    $region56: #{tpu_custom_call.1} parent=1 // pred_region
      %119 = dma.done [#allocation16], 16
    $region57: #{tpu_custom_call.1} parent=1 // pred_fallthru
      _
    %s120 = smul.u32 0, 8
    %s121 = smul.u32 0, 8
    %p122 = scmp.eq.s32.totalorder 0, 0
    // Predicated region
    $region58: #{tpu_custom_call.1} parent=1 // pred_check
      %p123 = pneg %p122
    $region59: #{tpu_custom_call.1} parent=1 // pred_check_branch
      %125 = sbr.rel (%p123) target = $region61
    $region60: #{tpu_custom_call.1} parent=1 // pred_region
      %v126 = vld [vmem:[#allocation6] sm:$0xff]
      %v127 = vld [vmem:[#allocation6 + $0x8] sm:$0xff]
      %v128 = vld [vmem:[#allocation11] sm:$0xff]
      %v129 = vld [vmem:[#allocation11 + $0x8] sm:$0xff]
      %v130 = vld [vmem:[#allocation11 + $0x10] sm:$0xff]
      %v131 = vld [vmem:[#allocation11 + $0x18] sm:$0xff]
      %vm132 = vcmask 261120
      %v134 = vsel %vm132, %v126, 0
      %v137 = vsel %vm132, %v127, 0
      %139 = vmatprep.subr.mxu0 0.0
      %140 = vmatpush1.msra.mxu0 %v128
      %141 = vmatprep.subr.mxu0 0.0
      %142 = vmatpush1.msra.mxu0 %v129
      %143 = vmatprep.subr.mxu0 0.0
      %144 = vmatpush1.msra.mxu0 %v130
      %145 = vmatprep.subr.mxu0 0.0
      %146 = vmatpush1.msra.mxu0 %v131
      %147 = vmatprep.subr.mxu0 0.0
      %148 = vmatpush1.msra.mxu0 0.0
      %149 = vmatprep.subr.mxu0 0.0
      %150 = vmatpush1.msra.mxu0 0.0
      %151 = vmatprep.subr.mxu0 0.0
      %152 = vmatpush1.msra.mxu0 0.0
      %153 = vmatprep.subr.mxu0 0.0
      %154 = vmatpush1.msra.mxu0 0.0
      %155 = vmatprep.subr.mxu0 0.0
      %156 = vmatpush1.msra.mxu0 0.0
      %157 = vmatprep.subr.mxu0 0.0
      %158 = vmatpush1.msra.mxu0 0.0
      %159 = vmatprep.subr.mxu0 0.0
      %160 = vmatpush1.msra.mxu0 0.0
      %161 = vmatprep.subr.mxu0 0.0
      %162 = vmatpush1.msra.mxu0 0.0
      %163 = vmatprep.subr.mxu0 0.0
      %164 = vmatpush1.msra.mxu0 0.0
      %165 = vmatprep.subr.mxu0 0.0
      %166 = vmatpush1.msra.mxu0 0.0
      %167 = vmatprep.subr.mxu0 0.0
      %168 = vmatpush1.msra.mxu0 0.0
      %169 = vmatprep.subr.mxu0 0.0
      %170 = vmatpush1.msra.mxu0 0.0
      %171 = vmatprep.subr.mxu0 0.0
      %172 = vmatpush1.msra.mxu0 0.0
      %173 = vmatprep.subr.mxu0 0.0
      %174 = vmatpush1.msra.mxu0 0.0
      %175 = vmatprep.subr.mxu0 0.0
      %176 = vmatpush1.msra.mxu0 0.0
      %177 = vmatprep.subr.mxu0 0.0
      %178 = vmatpush1.msra.mxu0 0.0
      %179 = vmatprep.subr.mxu0 0.0
      %180 = vmatpush1.msra.mxu0 0.0
      %181 = vmatprep.subr.mxu0 0.0
      %182 = vmatpush1.msra.mxu0 0.0
      %183 = vmatprep.subr.mxu0 0.0
      %184 = vmatpush1.msra.mxu0 0.0
      %185 = vmatprep.subr.mxu0 0.0
      %186 = vmatpush1.msra.mxu0 0.0
      %187 = vmatprep.subr.mxu0 0.0
      %188 = vmatpush1.msra.mxu0 0.0
      %189 = vmatprep.subr.mxu0 0.0
      %190 = vmatpush1.msra.mxu0 0.0
      %191 = vmatprep.subr.mxu0 0.0
      %192 = vmatpush1.msra.mxu0 0.0
      %193 = vmatprep.subr.mxu0 0.0
      %194 = vmatpush1.msra.mxu0 0.0
      %195 = vmatprep.subr.mxu0 0.0
      %196 = vmatpush1.msra.mxu0 0.0
      %197 = vmatprep.subr.mxu0 0.0
      %198 = vmatpush1.msra.mxu0 0.0
      %199 = vmatprep.subr.mxu0 0.0
      %200 = vmatpush1.msra.mxu0 0.0
      %201 = vmatprep.subr.mxu0 0.0
      %202 = vmatpush1.msra.mxu0 0.0
      %203 = vmatprep.mubr.f32.mxu0 0.0
      %204 = vmatmul.mubr.f32.gmra.mrb[0].mxu0 %v134
      %v205 = vpop.f32.mrb[0].mxu0
      %v206 = vadd.f32 0.0, %v205
      %v207 = vpop.f32.mrb[0].mxu0
      %208 = vmatprep.mubr.f32.mxu0 0.0
      %209 = vmatmul.mubr.f32.gmra.mrb[0].mxu0 %v137
      %v210 = vpop.f32.mrb[0].mxu0
      %v211 = vadd.f32 0.0, %v210
      %v212 = vpop.f32.mrb[0].mxu0
      %213 = vdwg.mxu0
      %v214 = vmul.f32 %v206, 0.35355338
      %v215 = vmul.f32 %v211, 0.35355338
      %216 = vst.msk [vmem:[#allocation2] sm:$0xff] %vm132, %v214
      %217 = vst.msk [vmem:[#allocation2 + $0x8] sm:$0xff] %vm132, %v215
      %vm218 = vcmask 7168
      %219 = vst.msk [vmem:[#allocation4] sm:$0xff] %vm218, -1e+30
      %220 = vst.msk [vmem:[#allocation4 + $0x8] sm:$0xff] %vm218, -1e+30
      %221 = vst.msk [vmem:[#allocation4 + $0x10] sm:$0xff] %vm218, -1e+30
      %222 = vst.msk [vmem:[#allocation4 + $0x18] sm:$0xff] %vm218, -1e+30
      %223 = vst.msk [vmem:[#allocation4 + $0x20] sm:$0xff] %vm218, -1e+30
      %224 = vst.msk [vmem:[#allocation4 + $0x28] sm:$0xff] %vm218, -1e+30
      %225 = vst.msk [vmem:[#allocation4 + $0x30] sm:$0xff] %vm218, -1e+30
      %226 = vst.msk [vmem:[#allocation4 + $0x38] sm:$0xff] %vm218, -1e+30
      %227 = vst.msk [vmem:[#allocation5] sm:$0xff] %vm218, 0.0
      %228 = vst.msk [vmem:[#allocation5 + $0x8] sm:$0xff] %vm218, 0.0
      %229 = vst.msk [vmem:[#allocation5 + $0x10] sm:$0xff] %vm218, 0.0
      %230 = vst.msk [vmem:[#allocation5 + $0x18] sm:$0xff] %vm218, 0.0
      %231 = vst.msk [vmem:[#allocation5 + $0x20] sm:$0xff] %vm218, 0.0
      %232 = vst.msk [vmem:[#allocation5 + $0x28] sm:$0xff] %vm218, 0.0
      %233 = vst.msk [vmem:[#allocation5 + $0x30] sm:$0xff] %vm218, 0.0
      %234 = vst.msk [vmem:[#allocation5 + $0x38] sm:$0xff] %vm218, 0.0
      %235 = vst.msk [vmem:[#allocation3] sm:$0xff] %vm132, 0.0
      %236 = vst.msk [vmem:[#allocation3 + $0x8] sm:$0xff] %vm132, 0.0
    $region61: #{tpu_custom_call.1} parent=1 // pred_fallthru
      _
    %s237 = sadd.s32 %s120, 7
    %p238 = scmp.le.s32.totalorder %s121, %s237
    // Predicated region
    $region62: #{tpu_custom_call.1} parent=1 // pred_check
      %p239 = pneg %p238
    $region63: #{tpu_custom_call.1} parent=1 // pred_check_branch
      %241 = sbr.rel (%p239) target = $region65
    $region64: #{tpu_custom_call.1} parent=1 // pred_region
      %v242 = vld [vmem:[#allocation9] sm:$0xff]
      %v243 = vld [vmem:[#allocation9 + $0x8] sm:$0xff]
      %v244 = vld [vmem:[#allocation12] sm:$0xff]
      %v245 = vld [vmem:[#allocation12 + $0x8] sm:$0xff]
      %v246 = vld [vmem:[#allocation12 + $0x10] sm:$0xff]
      %v247 = vld [vmem:[#allocation12 + $0x18] sm:$0xff]
      %vm248 = vcmask 261120
      %v250 = vsel %vm248, %v242, 0
      %v253 = vsel %vm248, %v243, 0
      %255 = vmatprep.subr.mxu0 0.0
      %256 = vmatpush1.msra.mxu0 %v244
      %257 = vmatprep.subr.mxu0 0.0
      %258 = vmatpush1.msra.mxu0 %v245
      %259 = vmatprep.subr.mxu0 0.0
      %260 = vmatpush1.msra.mxu0 %v246
      %261 = vmatprep.subr.mxu0 0.0
      %262 = vmatpush1.msra.mxu0 %v247
      %263 = vmatprep.subr.mxu0 0.0
      %264 = vmatpush1.msra.mxu0 0.0
      %265 = vmatprep.subr.mxu0 0.0
      %266 = vmatpush1.msra.mxu0 0.0
      %267 = vmatprep.subr.mxu0 0.0
      %268 = vmatpush1.msra.mxu0 0.0
      %269 = vmatprep.subr.mxu0 0.0
      %270 = vmatpush1.msra.mxu0 0.0
      %271 = vmatprep.subr.mxu0 0.0
      %272 = vmatpush1.msra.mxu0 0.0
      %273 = vmatprep.subr.mxu0 0.0
      %274 = vmatpush1.msra.mxu0 0.0
      %275 = vmatprep.subr.mxu0 0.0
      %276 = vmatpush1.msra.mxu0 0.0
      %277 = vmatprep.subr.mxu0 0.0
      %278 = vmatpush1.msra.mxu0 0.0
      %279 = vmatprep.subr.mxu0 0.0
      %280 = vmatpush1.msra.mxu0 0.0
      %281 = vmatprep.subr.mxu0 0.0
      %282 = vmatpush1.msra.mxu0 0.0
      %283 = vmatprep.subr.mxu0 0.0
      %284 = vmatpush1.msra.mxu0 0.0
      %285 = vmatprep.subr.mxu0 0.0
      %286 = vmatpush1.msra.mxu0 0.0
      %287 = vmatprep.subr.mxu0 0.0
      %288 = vmatpush1.msra.mxu0 0.0
      %289 = vmatprep.subr.mxu0 0.0
      %290 = vmatpush1.msra.mxu0 0.0
      %291 = vmatprep.subr.mxu0 0.0
      %292 = vmatpush1.msra.mxu0 0.0
      %293 = vmatprep.subr.mxu0 0.0
      %294 = vmatpush1.msra.mxu0 0.0
      %295 = vmatprep.subr.mxu0 0.0
      %296 = vmatpush1.msra.mxu0 0.0
      %297 = vmatprep.subr.mxu0 0.0
      %298 = vmatpush1.msra.mxu0 0.0
      %299 = vmatprep.subr.mxu0 0.0
      %300 = vmatpush1.msra.mxu0 0.0
      %301 = vmatprep.subr.mxu0 0.0
      %302 = vmatpush1.msra.mxu0 0.0
      %303 = vmatprep.subr.mxu0 0.0
      %304 = vmatpush1.msra.mxu0 0.0
      %305 = vmatprep.subr.mxu0 0.0
      %306 = vmatpush1.msra.mxu0 0.0
      %307 = vmatprep.subr.mxu0 0.0
      %308 = vmatpush1.msra.mxu0 0.0
      %309 = vmatprep.subr.mxu0 0.0
      %310 = vmatpush1.msra.mxu0 0.0
      %311 = vmatprep.subr.mxu0 0.0
      %312 = vmatpush1.msra.mxu0 0.0
      %313 = vmatprep.subr.mxu0 0.0
      %314 = vmatpush1.msra.mxu0 0.0
      %315 = vmatprep.subr.mxu0 0.0
      %316 = vmatpush1.msra.mxu0 0.0
      %317 = vmatprep.subr.mxu0 0.0
      %318 = vmatpush1.msra.mxu0 0.0
      %319 = vmatprep.mubr.f32.mxu0 0.0
      %320 = vmatmul.mubr.f32.gmra.mrb[0].mxu0 %v250
      %v321 = vpop.f32.mrb[0].mxu0
      %v322 = vadd.f32 0.0, %v321
      %v323 = vpop.f32.mrb[0].mxu0
      %324 = vmatprep.mubr.f32.mxu0 0.0
      %325 = vmatmul.mubr.f32.gmra.mrb[0].mxu0 %v253
      %v326 = vpop.f32.mrb[0].mxu0
      %v327 = vadd.f32 0.0, %v326
      %v328 = vpop.f32.mrb[0].mxu0
      %329 = vdwg.mxu0
      %v330 = vld [vmem:[#allocation14] sm:$0xff]
      %v331 = vld [vmem:[#allocation14 + $0x8] sm:$0xff]
      %v332 = vld [vmem:[#allocation14 + $0x10] sm:$0xff]
      %v333 = vld [vmem:[#allocation14 + $0x18] sm:$0xff]
      %334 = vmatprep.subr.mxu0 0.0
      %335 = vmatpush1.msra.mxu0 %v330
      %336 = vmatprep.subr.mxu0 0.0
      %337 = vmatpush1.msra.mxu0 %v331
      %338 = vmatprep.subr.mxu0 0.0
      %339 = vmatpush1.msra.mxu0 %v332
      %340 = vmatprep.subr.mxu0 0.0
      %341 = vmatpush1.msra.mxu0 %v333
      %342 = vmatprep.subr.mxu0 0.0
      %343 = vmatpush1.msra.mxu0 0.0
      %344 = vmatprep.subr.mxu0 0.0
      %345 = vmatpush1.msra.mxu0 0.0
      %346 = vmatprep.subr.mxu0 0.0
      %347 = vmatpush1.msra.mxu0 0.0
      %348 = vmatprep.subr.mxu0 0.0
      %349 = vmatpush1.msra.mxu0 0.0
      %350 = vmatprep.subr.mxu0 0.0
      %351 = vmatpush1.msra.mxu0 0.0
      %352 = vmatprep.subr.mxu0 0.0
      %353 = vmatpush1.msra.mxu0 0.0
      %354 = vmatprep.subr.mxu0 0.0
      %355 = vmatpush1.msra.mxu0 0.0
      %356 = vmatprep.subr.mxu0 0.0
      %357 = vmatpush1.msra.mxu0 0.0
      %358 = vmatprep.subr.mxu0 0.0
      %359 = vmatpush1.msra.mxu0 0.0
      %360 = vmatprep.subr.mxu0 0.0
      %361 = vmatpush1.msra.mxu0 0.0
      %362 = vmatprep.subr.mxu0 0.0
      %363 = vmatpush1.msra.mxu0 0.0
      %364 = vmatprep.subr.mxu0 0.0
      %365 = vmatpush1.msra.mxu0 0.0
      %366 = vmatprep.subr.mxu0 0.0
      %367 = vmatpush1.msra.mxu0 0.0
      %368 = vmatprep.subr.mxu0 0.0
      %369 = vmatpush1.msra.mxu0 0.0
      %370 = vmatprep.subr.mxu0 0.0
      %371 = vmatpush1.msra.mxu0 0.0
      %372 = vmatprep.subr.mxu0 0.0
      %373 = vmatpush1.msra.mxu0 0.0
      %374 = vmatprep.subr.mxu0 0.0
      %375 = vmatpush1.msra.mxu0 0.0
      %376 = vmatprep.subr.mxu0 0.0
      %377 = vmatpush1.msra.mxu0 0.0
      %378 = vmatprep.subr.mxu0 0.0
      %379 = vmatpush1.msra.mxu0 0.0
      %380 = vmatprep.subr.mxu0 0.0
      %381 = vmatpush1.msra.mxu0 0.0
      %382 = vmatprep.subr.mxu0 0.0
      %383 = vmatpush1.msra.mxu0 0.0
      %384 = vmatprep.subr.mxu0 0.0
      %385 = vmatpush1.msra.mxu0 0.0
      %386 = vmatprep.subr.mxu0 0.0
      %387 = vmatpush1.msra.mxu0 0.0
      %388 = vmatprep.subr.mxu0 0.0
      %389 = vmatpush1.msra.mxu0 0.0
      %390 = vmatprep.subr.mxu0 0.0
      %391 = vmatpush1.msra.mxu0 0.0
      %392 = vmatprep.subr.mxu0 0.0
      %393 = vmatpush1.msra.mxu0 0.0
      %394 = vmatprep.subr.mxu0 0.0
      %395 = vmatpush1.msra.mxu0 0.0
      %396 = vmatprep.subr.mxu0 0.0
      %397 = vmatpush1.msra.mxu0 0.0
      %398 = vmatprep.mubr.f32.mxu0 0.0
      %399 = vmatmul.mubr.f32.gmra.mrb[0].mxu0 %v250
      %v400 = vpop.f32.mrb[0].mxu0
      %v401 = vadd.f32 0.0, %v400
      %v402 = vpop.f32.mrb[0].mxu0
      %403 = vmatprep.mubr.f32.mxu0 0.0
      %404 = vmatmul.mubr.f32.gmra.mrb[0].mxu0 %v253
      %v405 = vpop.f32.mrb[0].mxu0
      %v406 = vadd.f32 0.0, %v405
      %v407 = vpop.f32.mrb[0].mxu0
      %408 = vdwg.mxu0
      %v409 = vlaneseq
      %v410 = vshrl.u32 %v409, 7
      %v411 = vstv %s120
      %v412 = vadd.s32 %v411, %v410
      %v413 = vlaneseq
      %v414 = vand.u32 %v413, 127
      %v415 = vstv %s121
      %v416 = vadd.s32 %v415, %v414
      %vm417 = vcmp.le.s32.totalorder %v416, %v412
      %v418 = vsel %vm417, 0.0, -1e+30
      %v419 = vld [vmem:[#allocation2] sm:$0xff]
      %v420 = vld [vmem:[#allocation2 + $0x8] sm:$0xff]
      %vm421 = vcmask 64512
      %v423 = vsel %vm421, %v419, 0
      %v426 = vsel %vm421, %v322, 0
      %428 = vmatprep.subr.mxu0 0.0
      %429 = vmatpush1.xpose.msra.mxu0 %v426
      %430 = vmatprep.subr.mxu0 0.0
      %431 = vmatpush1.xpose.msra.mxu0 0.0
      %432 = vmatprep.subr.mxu0 0.0
      %433 = vmatpush1.xpose.msra.mxu0 0.0
      %434 = vmatprep.subr.mxu0 0.0
      %435 = vmatpush1.xpose.msra.mxu0 0.0
      %436 = vmatprep.subr.mxu0 0.0
      %437 = vmatpush1.xpose.msra.mxu0 0.0
      %438 = vmatprep.subr.mxu0 0.0
      %439 = vmatpush1.xpose.msra.mxu0 0.0
      %440 = vmatprep.subr.mxu0 0.0
      %441 = vmatpush1.xpose.msra.mxu0 0.0
      %442 = vmatprep.subr.mxu0 0.0
      %443 = vmatpush1.xpose.msra.mxu0 0.0
      %444 = vmatprep.subr.mxu0 0.0
      %445 = vmatpush1.xpose.msra.mxu0 0.0
      %446 = vmatprep.subr.mxu0 0.0
      %447 = vmatpush1.xpose.msra.mxu0 0.0
      %448 = vmatprep.subr.mxu0 0.0
      %449 = vmatpush1.xpose.msra.mxu0 0.0
      %450 = vmatprep.subr.mxu0 0.0
      %451 = vmatpush1.xpose.msra.mxu0 0.0
      %452 = vmatprep.subr.mxu0 0.0
      %453 = vmatpush1.xpose.msra.mxu0 0.0
      %454 = vmatprep.subr.mxu0 0.0
      %455 = vmatpush1.xpose.msra.mxu0 0.0
      %456 = vmatprep.subr.mxu0 0.0
      %457 = vmatpush1.xpose.msra.mxu0 0.0
      %458 = vmatprep.subr.mxu0 0.0
      %459 = vmatpush1.xpose.msra.mxu0 0.0
      %460 = vmatprep.subr.mxu0 0.0
      %461 = vmatpush1.xpose.msra.mxu0 0.0
      %462 = vmatprep.subr.mxu0 0.0
      %463 = vmatpush1.xpose.msra.mxu0 0.0
      %464 = vmatprep.subr.mxu0 0.0
      %465 = vmatpush1.xpose.msra.mxu0 0.0
      %466 = vmatprep.subr.mxu0 0.0
      %467 = vmatpush1.xpose.msra.mxu0 0.0
      %468 = vmatprep.subr.mxu0 0.0
      %469 = vmatpush1.xpose.msra.mxu0 0.0
      %470 = vmatprep.subr.mxu0 0.0
      %471 = vmatpush1.xpose.msra.mxu0 0.0
      %472 = vmatprep.subr.mxu0 0.0
      %473 = vmatpush1.xpose.msra.mxu0 0.0
      %474 = vmatprep.subr.mxu0 0.0
      %475 = vmatpush1.xpose.msra.mxu0 0.0
      %476 = vmatprep.subr.mxu0 0.0
      %477 = vmatpush1.xpose.msra.mxu0 0.0
      %478 = vmatprep.subr.mxu0 0.0
      %479 = vmatpush1.xpose.msra.mxu0 0.0
      %480 = vmatprep.subr.mxu0 0.0
      %481 = vmatpush1.xpose.msra.mxu0 0.0
      %482 = vmatprep.subr.mxu0 0.0
      %483 = vmatpush1.xpose.msra.mxu0 0.0
      %484 = vmatprep.subr.mxu0 0.0
      %485 = vmatpush1.xpose.msra.mxu0 0.0
      %486 = vmatprep.subr.mxu0 0.0
      %487 = vmatpush1.xpose.msra.mxu0 0.0
      %488 = vmatprep.subr.mxu0 0.0
      %489 = vmatpush1.xpose.msra.mxu0 0.0
      %490 = vmatprep.subr.mxu0 0.0
      %491 = vmatpush1.xpose.msra.mxu0 0.0
      %492 = vmatprep.mubr.f32.mxu0 0.0
      %493 = vmatmul.mubr.f32.gmra.mrb[0].mxu0 %v423
      %v494 = vpop.f32.mrb[0].mxu0
      %v495 = vadd.f32 %v418, %v494
      %v496 = vpop.f32.mrb[0].mxu0
      %497 = vdwg.mxu0
      %v499 = vsel %vm421, %v420, 0
      %v502 = vsel %vm421, %v327, 0
      %504 = vmatprep.subr.mxu0 0.0
      %505 = vmatpush1.xpose.msra.mxu0 %v502
      %506 = vmatprep.subr.mxu0 0.0
      %507 = vmatpush1.xpose.msra.mxu0 0.0
      %508 = vmatprep.subr.mxu0 0.0
      %509 = vmatpush1.xpose.msra.mxu0 0.0
      %510 = vmatprep.subr.mxu0 0.0
      %511 = vmatpush1.xpose.msra.mxu0 0.0
      %512 = vmatprep.subr.mxu0 0.0
      %513 = vmatpush1.xpose.msra.mxu0 0.0
      %514 = vmatprep.subr.mxu0 0.0
      %515 = vmatpush1.xpose.msra.mxu0 0.0
      %516 = vmatprep.subr.mxu0 0.0
      %517 = vmatpush1.xpose.msra.mxu0 0.0
      %518 = vmatprep.subr.mxu0 0.0
      %519 = vmatpush1.xpose.msra.mxu0 0.0
      %520 = vmatprep.subr.mxu0 0.0
      %521 = vmatpush1.xpose.msra.mxu0 0.0
      %522 = vmatprep.subr.mxu0 0.0
      %523 = vmatpush1.xpose.msra.mxu0 0.0
      %524 = vmatprep.subr.mxu0 0.0
      %525 = vmatpush1.xpose.msra.mxu0 0.0
      %526 = vmatprep.subr.mxu0 0.0
      %527 = vmatpush1.xpose.msra.mxu0 0.0
      %528 = vmatprep.subr.mxu0 0.0
      %529 = vmatpush1.xpose.msra.mxu0 0.0
      %530 = vmatprep.subr.mxu0 0.0
      %531 = vmatpush1.xpose.msra.mxu0 0.0
      %532 = vmatprep.subr.mxu0 0.0
      %533 = vmatpush1.xpose.msra.mxu0 0.0
      %534 = vmatprep.subr.mxu0 0.0
      %535 = vmatpush1.xpose.msra.mxu0 0.0
      %536 = vmatprep.subr.mxu0 0.0
      %537 = vmatpush1.xpose.msra.mxu0 0.0
      %538 = vmatprep.subr.mxu0 0.0
      %539 = vmatpush1.xpose.msra.mxu0 0.0
      %540 = vmatprep.subr.mxu0 0.0
      %541 = vmatpush1.xpose.msra.mxu0 0.0
      %542 = vmatprep.subr.mxu0 0.0
      %543 = vmatpush1.xpose.msra.mxu0 0.0
      %544 = vmatprep.subr.mxu0 0.0
      %545 = vmatpush1.xpose.msra.mxu0 0.0
      %546 = vmatprep.subr.mxu0 0.0
      %547 = vmatpush1.xpose.msra.mxu0 0.0
      %548 = vmatprep.subr.mxu0 0.0
      %549 = vmatpush1.xpose.msra.mxu0 0.0
      %550 = vmatprep.subr.mxu0 0.0
      %551 = vmatpush1.xpose.msra.mxu0 0.0
      %552 = vmatprep.subr.mxu0 0.0
      %553 = vmatpush1.xpose.msra.mxu0 0.0
      %554 = vmatprep.subr.mxu0 0.0
      %555 = vmatpush1.xpose.msra.mxu0 0.0
      %556 = vmatprep.subr.mxu0 0.0
      %557 = vmatpush1.xpose.msra.mxu0 0.0
      %558 = vmatprep.subr.mxu0 0.0
      %559 = vmatpush1.xpose.msra.mxu0 0.0
      %560 = vmatprep.subr.mxu0 0.0
      %561 = vmatpush1.xpose.msra.mxu0 0.0
      %562 = vmatprep.subr.mxu0 0.0
      %563 = vmatpush1.xpose.msra.mxu0 0.0
      %564 = vmatprep.subr.mxu0 0.0
      %565 = vmatpush1.xpose.msra.mxu0 0.0
      %566 = vmatprep.subr.mxu0 0.0
      %567 = vmatpush1.xpose.msra.mxu0 0.0
      %568 = vmatprep.mubr.f32.mxu0 0.0
      %569 = vmatmul.mubr.f32.gmra.mrb[0].mxu0 %v499
      %v570 = vpop.f32.mrb[0].mxu0
      %v571 = vadd.f32 %v418, %v570
      %v572 = vpop.f32.mrb[0].mxu0
      %573 = vdwg.mxu0
      %v574 = vld [vmem:[#allocation4] sm:$0xff]
      %v575 = vld [vmem:[#allocation4 + $0x8] sm:$0xff]
      %v576 = vsel %vm421, %v495, -inf
      %577 = vmax.xlane.f32.xlu0 %v576
      %v578 = vpop.xlane.xlu0 %577
      %v579 = vsel %vm421, %v571, -inf
      %580 = vmax.xlane.f32.xlu0 %v579
      %v581 = vpop.xlane.xlu0 %580
      %v582 = vmax.f32 %v574, %v578
      %v583 = vmax.f32 %v575, %v581
      %v584 = vsub.f32 %v574, %v582
      %v585 = vsub.f32 %v575, %v583
      %v586 = vmul.f32 %v584, 1.442695
      %v587 = vpow.pop %v586
      %v588 = vmul.f32 %v585, 1.442695
      %v589 = vpow.pop %v588
      %591 = vset.pattern.permute.xlu0 0
      %592 = vperm.xlu0 %591, %v582
      %v593 = vpop.permute.xlu0 %592
      %596 = vset.pattern.permute.xlu0 0
      %597 = vperm.xlu0 %596, %v583
      %v598 = vpop.permute.xlu0 %597
      %v600 = vsub.f32 %v495, %v593
      %v601 = vsub.f32 %v571, %v598
      %v602 = vmul.f32 %v600, 1.442695
      %v603 = vpow.pop %v602
      %v604 = vmul.f32 %v601, 1.442695
      %v605 = vpow.pop %v604
      %v606 = vld [vmem:[#allocation5] sm:$0xff]
      %v607 = vld [vmem:[#allocation5 + $0x8] sm:$0xff]
      %v608 = vmul.f32 %v587, %v606
      %v609 = vmul.f32 %v589, %v607
      %v610 = vsel %vm421, %v603, 0.0
      %611 = vadd.xlane.f32.xlu0 %v610
      %v612 = vpop.xlane.xlu0 %611
      %v613 = vsel %vm421, %v605, 0.0
      %614 = vadd.xlane.f32.xlu0 %v613
      %v615 = vpop.xlane.xlu0 %614
      %v616 = vadd.f32 %v608, %v612
      %v617 = vadd.f32 %v609, %v615
      %vm618 = vcmask 7168
      %619 = vst.msk [vmem:[#allocation5] sm:$0xff] %vm618, %v616
      %620 = vst.msk [vmem:[#allocation5 + $0x8] sm:$0xff] %vm618, %v617
      %v622 = vsel %vm421, %v603, 0
      %624 = vmatprep.subr.mxu0 0.0
      %625 = vmatpush1.msra.mxu0 %v401
      %626 = vmatprep.subr.mxu0 0.0
      %627 = vmatpush1.msra.mxu0 0.0
      %628 = vmatprep.subr.mxu0 0.0
      %629 = vmatpush1.msra.mxu0 0.0
      %630 = vmatprep.subr.mxu0 0.0
      %631 = vmatpush1.msra.mxu0 0.0
      %632 = vmatprep.subr.mxu0 0.0
      %633 = vmatpush1.msra.mxu0 0.0
      %634 = vmatprep.subr.mxu0 0.0
      %635 = vmatpush1.msra.mxu0 0.0
      %636 = vmatprep.subr.mxu0 0.0
      %637 = vmatpush1.msra.mxu0 0.0
      %638 = vmatprep.subr.mxu0 0.0
      %639 = vmatpush1.msra.mxu0 0.0
      %640 = vmatprep.subr.mxu0 0.0
      %641 = vmatpush1.msra.mxu0 0.0
      %642 = vmatprep.subr.mxu0 0.0
      %643 = vmatpush1.msra.mxu0 0.0
      %644 = vmatprep.subr.mxu0 0.0
      %645 = vmatpush1.msra.mxu0 0.0
      %646 = vmatprep.subr.mxu0 0.0
      %647 = vmatpush1.msra.mxu0 0.0
      %648 = vmatprep.subr.mxu0 0.0
      %649 = vmatpush1.msra.mxu0 0.0
      %650 = vmatprep.subr.mxu0 0.0
      %651 = vmatpush1.msra.mxu0 0.0
      %652 = vmatprep.subr.mxu0 0.0
      %653 = vmatpush1.msra.mxu0 0.0
      %654 = vmatprep.subr.mxu0 0.0
      %655 = vmatpush1.msra.mxu0 0.0
      %656 = vmatprep.subr.mxu0 0.0
      %657 = vmatpush1.msra.mxu0 0.0
      %658 = vmatprep.subr.mxu0 0.0
      %659 = vmatpush1.msra.mxu0 0.0
      %660 = vmatprep.subr.mxu0 0.0
      %661 = vmatpush1.msra.mxu0 0.0
      %662 = vmatprep.subr.mxu0 0.0
      %663 = vmatpush1.msra.mxu0 0.0
      %664 = vmatprep.subr.mxu0 0.0
      %665 = vmatpush1.msra.mxu0 0.0
      %666 = vmatprep.subr.mxu0 0.0
      %667 = vmatpush1.msra.mxu0 0.0
      %668 = vmatprep.subr.mxu0 0.0
      %669 = vmatpush1.msra.mxu0 0.0
      %670 = vmatprep.subr.mxu0 0.0
      %671 = vmatpush1.msra.mxu0 0.0
      %672 = vmatprep.subr.mxu0 0.0
      %673 = vmatpush1.msra.mxu0 0.0
      %674 = vmatprep.subr.mxu0 0.0
      %675 = vmatpush1.msra.mxu0 0.0
      %676 = vmatprep.subr.mxu0 0.0
      %677 = vmatpush1.msra.mxu0 0.0
      %678 = vmatprep.subr.mxu0 0.0
      %679 = vmatpush1.msra.mxu0 0.0
      %680 = vmatprep.subr.mxu0 0.0
      %681 = vmatpush1.msra.mxu0 0.0
      %682 = vmatprep.subr.mxu0 0.0
      %683 = vmatpush1.msra.mxu0 0.0
      %684 = vmatprep.subr.mxu0 0.0
      %685 = vmatpush1.msra.mxu0 0.0
      %686 = vmatprep.subr.mxu0 0.0
      %687 = vmatpush1.msra.mxu0 0.0
      %688 = vmatprep.mubr.f32.mxu0 0.0
      %689 = vmatmul.mubr.f32.gmra.mrb[0].mxu0 %v622
      %v690 = vpop.f32.mrb[0].mxu0
      %v691 = vadd.f32 0.0, %v690
      %v692 = vpop.f32.mrb[0].mxu0
      %693 = vdwg.mxu0
      %v695 = vsel %vm421, %v605, 0
      %697 = vmatprep.subr.mxu0 0.0
      %698 = vmatpush1.msra.mxu0 %v406
      %699 = vmatprep.subr.mxu0 0.0
      %700 = vmatpush1.msra.mxu0 0.0
      %701 = vmatprep.subr.mxu0 0.0
      %702 = vmatpush1.msra.mxu0 0.0
      %703 = vmatprep.subr.mxu0 0.0
      %704 = vmatpush1.msra.mxu0 0.0
      %705 = vmatprep.subr.mxu0 0.0
      %706 = vmatpush1.msra.mxu0 0.0
      %707 = vmatprep.subr.mxu0 0.0
      %708 = vmatpush1.msra.mxu0 0.0
      %709 = vmatprep.subr.mxu0 0.0
      %710 = vmatpush1.msra.mxu0 0.0
      %711 = vmatprep.subr.mxu0 0.0
      %712 = vmatpush1.msra.mxu0 0.0
      %713 = vmatprep.subr.mxu0 0.0
      %714 = vmatpush1.msra.mxu0 0.0
      %715 = vmatprep.subr.mxu0 0.0
      %716 = vmatpush1.msra.mxu0 0.0
      %717 = vmatprep.subr.mxu0 0.0
      %718 = vmatpush1.msra.mxu0 0.0
      %719 = vmatprep.subr.mxu0 0.0
      %720 = vmatpush1.msra.mxu0 0.0
      %721 = vmatprep.subr.mxu0 0.0
      %722 = vmatpush1.msra.mxu0 0.0
      %723 = vmatprep.subr.mxu0 0.0
      %724 = vmatpush1.msra.mxu0 0.0
      %725 = vmatprep.subr.mxu0 0.0
      %726 = vmatpush1.msra.mxu0 0.0
      %727 = vmatprep.subr.mxu0 0.0
      %728 = vmatpush1.msra.mxu0 0.0
      %729 = vmatprep.subr.mxu0 0.0
      %730 = vmatpush1.msra.mxu0 0.0
      %731 = vmatprep.subr.mxu0 0.0
      %732 = vmatpush1.msra.mxu0 0.0
      %733 = vmatprep.subr.mxu0 0.0
      %734 = vmatpush1.msra.mxu0 0.0
      %735 = vmatprep.subr.mxu0 0.0
      %736 = vmatpush1.msra.mxu0 0.0
      %737 = vmatprep.subr.mxu0 0.0
      %738 = vmatpush1.msra.mxu0 0.0
      %739 = vmatprep.subr.mxu0 0.0
      %740 = vmatpush1.msra.mxu0 0.0
      %741 = vmatprep.subr.mxu0 0.0
      %742 = vmatpush1.msra.mxu0 0.0
      %743 = vmatprep.subr.mxu0 0.0
      %744 = vmatpush1.msra.mxu0 0.0
      %745 = vmatprep.subr.mxu0 0.0
      %746 = vmatpush1.msra.mxu0 0.0
      %747 = vmatprep.subr.mxu0 0.0
      %748 = vmatpush1.msra.mxu0 0.0
      %749 = vmatprep.subr.mxu0 0.0
      %750 = vmatpush1.msra.mxu0 0.0
      %751 = vmatprep.subr.mxu0 0.0
      %752 = vmatpush1.msra.mxu0 0.0
      %753 = vmatprep.subr.mxu0 0.0
      %754 = vmatpush1.msra.mxu0 0.0
      %755 = vmatprep.subr.mxu0 0.0
      %756 = vmatpush1.msra.mxu0 0.0
      %757 = vmatprep.subr.mxu0 0.0
      %758 = vmatpush1.msra.mxu0 0.0
      %759 = vmatprep.subr.mxu0 0.0
      %760 = vmatpush1.msra.mxu0 0.0
      %761 = vmatprep.mubr.f32.mxu0 0.0
      %762 = vmatmul.mubr.f32.gmra.mrb[0].mxu0 %v695
      %v763 = vpop.f32.mrb[0].mxu0
      %v764 = vadd.f32 0.0, %v763
      %v765 = vpop.f32.mrb[0].mxu0
      %766 = vdwg.mxu0
      %v767 = vld [vmem:[#allocation3] sm:$0xff]
      %v768 = vld [vmem:[#allocation3 + $0x8] sm:$0xff]
      %770 = vset.pattern.permute.xlu0 0
      %771 = vperm.xlu0 %770, %v587
      %v772 = vpop.permute.xlu0 %771
      %775 = vset.pattern.permute.xlu0 0
      %776 = vperm.xlu0 %775, %v589
      %v777 = vpop.permute.xlu0 %776
      %v779 = vmul.f32 %v772, %v767
      %v780 = vmul.f32 %v777, %v768
      %v781 = vadd.f32 %v779, %v691
      %v782 = vadd.f32 %v780, %v764
      %783 = vst.msk [vmem:[#allocation3] sm:$0xff] %vm421, %v781
      %784 = vst.msk [vmem:[#allocation3 + $0x8] sm:$0xff] %vm421, %v782
      %785 = vst.msk [vmem:[#allocation4] sm:$0xff] %vm618, %v582
      %786 = vst.msk [vmem:[#allocation4 + $0x8] sm:$0xff] %vm618, %v583
      %v787 = vld [vmem:[#allocation2] sm:$0xff]
      %v788 = vld [vmem:[#allocation2 + $0x8] sm:$0xff]
      %790 = vrot.lane.b32.xlu0 %v787, 120
      %v791 = vpop.permute.xlu0 %790
      %792 = vrot.lane.b32.xlu0 %v322, 120
      %v793 = vpop.permute.xlu0 %792
      %v794 = vsel %vm421, %v791, 0
      %v796 = vsel %vm421, %v793, 0
      %798 = vmatprep.subr.mxu0 0.0
      %799 = vmatpush1.xpose.msra.mxu0 %v796
      %800 = vmatprep.subr.mxu0 0.0
      %801 = vmatpush1.xpose.msra.mxu0 0.0
      %802 = vmatprep.subr.mxu0 0.0
      %803 = vmatpush1.xpose.msra.mxu0 0.0
      %804 = vmatprep.subr.mxu0 0.0
      %805 = vmatpush1.xpose.msra.mxu0 0.0
      %806 = vmatprep.subr.mxu0 0.0
      %807 = vmatpush1.xpose.msra.mxu0 0.0
      %808 = vmatprep.subr.mxu0 0.0
      %809 = vmatpush1.xpose.msra.mxu0 0.0
      %810 = vmatprep.subr.mxu0 0.0
      %811 = vmatpush1.xpose.msra.mxu0 0.0
      %812 = vmatprep.subr.mxu0 0.0
      %813 = vmatpush1.xpose.msra.mxu0 0.0
      %814 = vmatprep.subr.mxu0 0.0
      %815 = vmatpush1.xpose.msra.mxu0 0.0
      %816 = vmatprep.subr.mxu0 0.0
      %817 = vmatpush1.xpose.msra.mxu0 0.0
      %818 = vmatprep.subr.mxu0 0.0
      %819 = vmatpush1.xpose.msra.mxu0 0.0
      %820 = vmatprep.subr.mxu0 0.0
      %821 = vmatpush1.xpose.msra.mxu0 0.0
      %822 = vmatprep.subr.mxu0 0.0
      %823 = vmatpush1.xpose.msra.mxu0 0.0
      %824 = vmatprep.subr.mxu0 0.0
      %825 = vmatpush1.xpose.msra.mxu0 0.0
      %826 = vmatprep.subr.mxu0 0.0
      %827 = vmatpush1.xpose.msra.mxu0 0.0
      %828 = vmatprep.subr.mxu0 0.0
      %829 = vmatpush1.xpose.msra.mxu0 0.0
      %830 = vmatprep.subr.mxu0 0.0
      %831 = vmatpush1.xpose.msra.mxu0 0.0
      %832 = vmatprep.subr.mxu0 0.0
      %833 = vmatpush1.xpose.msra.mxu0 0.0
      %834 = vmatprep.subr.mxu0 0.0
      %835 = vmatpush1.xpose.msra.mxu0 0.0
      %836 = vmatprep.subr.mxu0 0.0
      %837 = vmatpush1.xpose.msra.mxu0 0.0
      %838 = vmatprep.subr.mxu0 0.0
      %839 = vmatpush1.xpose.msra.mxu0 0.0
      %840 = vmatprep.subr.mxu0 0.0
      %841 = vmatpush1.xpose.msra.mxu0 0.0
      %842 = vmatprep.subr.mxu0 0.0
      %843 = vmatpush1.xpose.msra.mxu0 0.0
      %844 = vmatprep.subr.mxu0 0.0
      %845 = vmatpush1.xpose.msra.mxu0 0.0
      %846 = vmatprep.subr.mxu0 0.0
      %847 = vmatpush1.xpose.msra.mxu0 0.0
      %848 = vmatprep.subr.mxu0 0.0
      %849 = vmatpush1.xpose.msra.mxu0 0.0
      %850 = vmatprep.subr.mxu0 0.0
      %851 = vmatpush1.xpose.msra.mxu0 0.0
      %852 = vmatprep.subr.mxu0 0.0
      %853 = vmatpush1.xpose.msra.mxu0 0.0
      %854 = vmatprep.subr.mxu0 0.0
      %855 = vmatpush1.xpose.msra.mxu0 0.0
      %856 = vmatprep.subr.mxu0 0.0
      %857 = vmatpush1.xpose.msra.mxu0 0.0
      %858 = vmatprep.subr.mxu0 0.0
      %859 = vmatpush1.xpose.msra.mxu0 0.0
      %860 = vmatprep.subr.mxu0 0.0
      %861 = vmatpush1.xpose.msra.mxu0 0.0
      %862 = vmatprep.mubr.f32.mxu0 0.0
      %863 = vmatmul.mubr.f32.gmra.mrb[0].mxu0 %v794
      %v864 = vpop.f32.mrb[0].mxu0
      %v865 = vadd.f32 %v418, %v864
      %v866 = vpop.f32.mrb[0].mxu0
      %867 = vdwg.mxu0
      %869 = vrot.lane.b32.xlu0 %v788, 120
      %v870 = vpop.permute.xlu0 %869
      %871 = vrot.lane.b32.xlu0 %v327, 120
      %v872 = vpop.permute.xlu0 %871
      %v873 = vsel %vm421, %v870, 0
      %v875 = vsel %vm421, %v872, 0
      %877 = vmatprep.subr.mxu0 0.0
      %878 = vmatpush1.xpose.msra.mxu0 %v875
      %879 = vmatprep.subr.mxu0 0.0
      %880 = vmatpush1.xpose.msra.mxu0 0.0
      %881 = vmatprep.subr.mxu0 0.0
      %882 = vmatpush1.xpose.msra.mxu0 0.0
      %883 = vmatprep.subr.mxu0 0.0
      %884 = vmatpush1.xpose.msra.mxu0 0.0
      %885 = vmatprep.subr.mxu0 0.0
      %886 = vmatpush1.xpose.msra.mxu0 0.0
      %887 = vmatprep.subr.mxu0 0.0
      %888 = vmatpush1.xpose.msra.mxu0 0.0
      %889 = vmatprep.subr.mxu0 0.0
      %890 = vmatpush1.xpose.msra.mxu0 0.0
      %891 = vmatprep.subr.mxu0 0.0
      %892 = vmatpush1.xpose.msra.mxu0 0.0
      %893 = vmatprep.subr.mxu0 0.0
      %894 = vmatpush1.xpose.msra.mxu0 0.0
      %895 = vmatprep.subr.mxu0 0.0
      %896 = vmatpush1.xpose.msra.mxu0 0.0
      %897 = vmatprep.subr.mxu0 0.0
      %898 = vmatpush1.xpose.msra.mxu0 0.0
      %899 = vmatprep.subr.mxu0 0.0
      %900 = vmatpush1.xpose.msra.mxu0 0.0
      %901 = vmatprep.subr.mxu0 0.0
      %902 = vmatpush1.xpose.msra.mxu0 0.0
      %903 = vmatprep.subr.mxu0 0.0
      %904 = vmatpush1.xpose.msra.mxu0 0.0
      %905 = vmatprep.subr.mxu0 0.0
      %906 = vmatpush1.xpose.msra.mxu0 0.0
      %907 = vmatprep.subr.mxu0 0.0
      %908 = vmatpush1.xpose.msra.mxu0 0.0
      %909 = vmatprep.subr.mxu0 0.0
      %910 = vmatpush1.xpose.msra.mxu0 0.0
      %911 = vmatprep.subr.mxu0 0.0
      %912 = vmatpush1.xpose.msra.mxu0 0.0
      %913 = vmatprep.subr.mxu0 0.0
      %914 = vmatpush1.xpose.msra.mxu0 0.0
      %915 = vmatprep.subr.mxu0 0.0
      %916 = vmatpush1.xpose.msra.mxu0 0.0
      %917 = vmatprep.subr.mxu0 0.0
      %918 = vmatpush1.xpose.msra.mxu0 0.0
      %919 = vmatprep.subr.mxu0 0.0
      %920 = vmatpush1.xpose.msra.mxu0 0.0
      %921 = vmatprep.subr.mxu0 0.0
      %922 = vmatpush1.xpose.msra.mxu0 0.0
      %923 = vmatprep.subr.mxu0 0.0
      %924 = vmatpush1.xpose.msra.mxu0 0.0
      %925 = vmatprep.subr.mxu0 0.0
      %926 = vmatpush1.xpose.msra.mxu0 0.0
      %927 = vmatprep.subr.mxu0 0.0
      %928 = vmatpush1.xpose.msra.mxu0 0.0
      %929 = vmatprep.subr.mxu0 0.0
      %930 = vmatpush1.xpose.msra.mxu0 0.0
      %931 = vmatprep.subr.mxu0 0.0
      %932 = vmatpush1.xpose.msra.mxu0 0.0
      %933 = vmatprep.subr.mxu0 0.0
      %934 = vmatpush1.xpose.msra.mxu0 0.0
      %935 = vmatprep.subr.mxu0 0.0
      %936 = vmatpush1.xpose.msra.mxu0 0.0
      %937 = vmatprep.subr.mxu0 0.0
      %938 = vmatpush1.xpose.msra.mxu0 0.0
      %939 = vmatprep.subr.mxu0 0.0
      %940 = vmatpush1.xpose.msra.mxu0 0.0
      %941 = vmatprep.mubr.f32.mxu0 0.0
      %942 = vmatmul.mubr.f32.gmra.mrb[0].mxu0 %v873
      %v943 = vpop.f32.mrb[0].mxu0
      %v944 = vadd.f32 %v418, %v943
      %v945 = vpop.f32.mrb[0].mxu0
      %946 = vdwg.mxu0
      %s947 = scalar_lea.vmem [#allocation4], 16
      %v948 = vld [vmem:[%s947] sm:$0xff]
      %v949 = vld [vmem:[%s947 + $0x8] sm:$0xff]
      %v950 = vsel %vm421, %v865, -inf
      %951 = vmax.xlane.f32.xlu0 %v950
      %v952 = vpop.xlane.xlu0 %951
      %v953 = vsel %vm421, %v944, -inf
      %954 = vmax.xlane.f32.xlu0 %v953
      %v955 = vpop.xlane.xlu0 %954
      %v956 = vmax.f32 %v948, %v952
      %v957 = vmax.f32 %v949, %v955
      %v958 = vsub.f32 %v948, %v956
      %v959 = vsub.f32 %v949, %v957
      %v960 = vmul.f32 %v958, 1.442695
      %v961 = vpow.pop %v960
      %v962 = vmul.f32 %v959, 1.442695
      %v963 = vpow.pop %v962
      %965 = vset.pattern.permute.xlu0 0
      %966 = vperm.xlu0 %965, %v956
      %v967 = vpop.permute.xlu0 %966
      %970 = vset.pattern.permute.xlu0 0
      %971 = vperm.xlu0 %970, %v957
      %v972 = vpop.permute.xlu0 %971
      %v974 = vsub.f32 %v865, %v967
      %v975 = vsub.f32 %v944, %v972
      %v976 = vmul.f32 %v974, 1.442695
      %v977 = vpow.pop %v976
      %v978 = vmul.f32 %v975, 1.442695
      %v979 = vpow.pop %v978
      %s980 = scalar_lea.vmem [#allocation5], 16
      %v981 = vld [vmem:[%s980] sm:$0xff]
      %v982 = vld [vmem:[%s980 + $0x8] sm:$0xff]
      %v983 = vmul.f32 %v961, %v981
      %v984 = vmul.f32 %v963, %v982
      %v985 = vsel %vm421, %v977, 0.0
      %986 = vadd.xlane.f32.xlu0 %v985
      %v987 = vpop.xlane.xlu0 %986
      %v988 = vsel %vm421, %v979, 0.0
      %989 = vadd.xlane.f32.xlu0 %v988
      %v990 = vpop.xlane.xlu0 %989
      %v991 = vadd.f32 %v983, %v987
      %v992 = vadd.f32 %v984, %v990
      %993 = vst.msk [vmem:[%s980] sm:$0xff] %vm618, %v991
      %994 = vst.msk [vmem:[%s980 + $0x8] sm:$0xff] %vm618, %v992
      %996 = vrot.lane.b32.xlu0 %v401, 120
      %v997 = vpop.permute.xlu0 %996
      %v1000 = vsel %vm421, %v977, 0
      %1002 = vmatprep.subr.mxu0 0.0
      %1003 = vmatpush1.msra.mxu0 %v997
      %1004 = vmatprep.subr.mxu0 0.0
      %1005 = vmatpush1.msra.mxu0 0.0
      %1006 = vmatprep.subr.mxu0 0.0
      %1007 = vmatpush1.msra.mxu0 0.0
      %1008 = vmatprep.subr.mxu0 0.0
      %1009 = vmatpush1.msra.mxu0 0.0
      %1010 = vmatprep.subr.mxu0 0.0
      %1011 = vmatpush1.msra.mxu0 0.0
      %1012 = vmatprep.subr.mxu0 0.0
      %1013 = vmatpush1.msra.mxu0 0.0
      %1014 = vmatprep.subr.mxu0 0.0
      %1015 = vmatpush1.msra.mxu0 0.0
      %1016 = vmatprep.subr.mxu0 0.0
      %1017 = vmatpush1.msra.mxu0 0.0
      %1018 = vmatprep.subr.mxu0 0.0
      %1019 = vmatpush1.msra.mxu0 0.0
      %1020 = vmatprep.subr.mxu0 0.0
      %1021 = vmatpush1.msra.mxu0 0.0
      %1022 = vmatprep.subr.mxu0 0.0
      %1023 = vmatpush1.msra.mxu0 0.0
      %1024 = vmatprep.subr.mxu0 0.0
      %1025 = vmatpush1.msra.mxu0 0.0
      %1026 = vmatprep.subr.mxu0 0.0
      %1027 = vmatpush1.msra.mxu0 0.0
      %1028 = vmatprep.subr.mxu0 0.0
      %1029 = vmatpush1.msra.mxu0 0.0
      %1030 = vmatprep.subr.mxu0 0.0
      %1031 = vmatpush1.msra.mxu0 0.0
      %1032 = vmatprep.subr.mxu0 0.0
      %1033 = vmatpush1.msra.mxu0 0.0
      %1034 = vmatprep.subr.mxu0 0.0
      %1035 = vmatpush1.msra.mxu0 0.0
      %1036 = vmatprep.subr.mxu0 0.0
      %1037 = vmatpush1.msra.mxu0 0.0
      %1038 = vmatprep.subr.mxu0 0.0
      %1039 = vmatpush1.msra.mxu0 0.0
      %1040 = vmatprep.subr.mxu0 0.0
      %1041 = vmatpush1.msra.mxu0 0.0
      %1042 = vmatprep.subr.mxu0 0.0
      %1043 = vmatpush1.msra.mxu0 0.0
      %1044 = vmatprep.subr.mxu0 0.0
      %1045 = vmatpush1.msra.mxu0 0.0
      %1046 = vmatprep.subr.mxu0 0.0
      %1047 = vmatpush1.msra.mxu0 0.0
      %1048 = vmatprep.subr.mxu0 0.0
      %1049 = vmatpush1.msra.mxu0 0.0
      %1050 = vmatprep.subr.mxu0 0.0
      %1051 = vmatpush1.msra.mxu0 0.0
      %1052 = vmatprep.subr.mxu0 0.0
      %1053 = vmatpush1.msra.mxu0 0.0
      %1054 = vmatprep.subr.mxu0 0.0
      %1055 = vmatpush1.msra.mxu0 0.0
      %1056 = vmatprep.subr.mxu0 0.0
      %1057 = vmatpush1.msra.mxu0 0.0
      %1058 = vmatprep.subr.mxu0 0.0
      %1059 = vmatpush1.msra.mxu0 0.0
      %1060 = vmatprep.subr.mxu0 0.0
      %1061 = vmatpush1.msra.mxu0 0.0
      %1062 = vmatprep.subr.mxu0 0.0
      %1063 = vmatpush1.msra.mxu0 0.0
      %1064 = vmatprep.subr.mxu0 0.0
      %1065 = vmatpush1.msra.mxu0 0.0
      %1066 = vmatprep.mubr.f32.mxu0 0.0
      %1067 = vmatmul.mubr.f32.gmra.mrb[0].mxu0 %v1000
      %v1068 = vpop.f32.mrb[0].mxu0
      %v1069 = vadd.f32 0.0, %v1068
      %v1070 = vpop.f32.mrb[0].mxu0
      %1071 = vdwg.mxu0
      %1073 = vrot.lane.b32.xlu0 %v406, 120
      %v1074 = vpop.permute.xlu0 %1073
      %v1077 = vsel %vm421, %v979, 0
      %1079 = vmatprep.subr.mxu0 0.0
      %1080 = vmatpush1.msra.mxu0 %v1074
      %1081 = vmatprep.subr.mxu0 0.0
      %1082 = vmatpush1.msra.mxu0 0.0
      %1083 = vmatprep.subr.mxu0 0.0
      %1084 = vmatpush1.msra.mxu0 0.0
      %1085 = vmatprep.subr.mxu0 0.0
      %1086 = vmatpush1.msra.mxu0 0.0
      %1087 = vmatprep.subr.mxu0 0.0
      %1088 = vmatpush1.msra.mxu0 0.0
      %1089 = vmatprep.subr.mxu0 0.0
      %1090 = vmatpush1.msra.mxu0 0.0
      %1091 = vmatprep.subr.mxu0 0.0
      %1092 = vmatpush1.msra.mxu0 0.0
      %1093 = vmatprep.subr.mxu0 0.0
      %1094 = vmatpush1.msra.mxu0 0.0
      %1095 = vmatprep.subr.mxu0 0.0
      %1096 = vmatpush1.msra.mxu0 0.0
      %1097 = vmatprep.subr.mxu0 0.0
      %1098 = vmatpush1.msra.mxu0 0.0
      %1099 = vmatprep.subr.mxu0 0.0
      %1100 = vmatpush1.msra.mxu0 0.0
      %1101 = vmatprep.subr.mxu0 0.0
      %1102 = vmatpush1.msra.mxu0 0.0
      %1103 = vmatprep.subr.mxu0 0.0
      %1104 = vmatpush1.msra.mxu0 0.0
      %1105 = vmatprep.subr.mxu0 0.0
      %1106 = vmatpush1.msra.mxu0 0.0
      %1107 = vmatprep.subr.mxu0 0.0
      %1108 = vmatpush1.msra.mxu0 0.0
      %1109 = vmatprep.subr.mxu0 0.0
      %1110 = vmatpush1.msra.mxu0 0.0
      %1111 = vmatprep.subr.mxu0 0.0
      %1112 = vmatpush1.msra.mxu0 0.0
      %1113 = vmatprep.subr.mxu0 0.0
      %1114 = vmatpush1.msra.mxu0 0.0
      %1115 = vmatprep.subr.mxu0 0.0
      %1116 = vmatpush1.msra.mxu0 0.0
      %1117 = vmatprep.subr.mxu0 0.0
      %1118 = vmatpush1.msra.mxu0 0.0
      %1119 = vmatprep.subr.mxu0 0.0
      %1120 = vmatpush1.msra.mxu0 0.0
      %1121 = vmatprep.subr.mxu0 0.0
      %1122 = vmatpush1.msra.mxu0 0.0
      %1123 = vmatprep.subr.mxu0 0.0
      %1124 = vmatpush1.msra.mxu0 0.0
      %1125 = vmatprep.subr.mxu0 0.0
      %1126 = vmatpush1.msra.mxu0 0.0
      %1127 = vmatprep.subr.mxu0 0.0
      %1128 = vmatpush1.msra.mxu0 0.0
      %1129 = vmatprep.subr.mxu0 0.0
      %1130 = vmatpush1.msra.mxu0 0.0
      %1131 = vmatprep.subr.mxu0 0.0
      %1132 = vmatpush1.msra.mxu0 0.0
      %1133 = vmatprep.subr.mxu0 0.0
      %1134 = vmatpush1.msra.mxu0 0.0
      %1135 = vmatprep.subr.mxu0 0.0
      %1136 = vmatpush1.msra.mxu0 0.0
      %1137 = vmatprep.subr.mxu0 0.0
      %1138 = vmatpush1.msra.mxu0 0.0
      %1139 = vmatprep.subr.mxu0 0.0
      %1140 = vmatpush1.msra.mxu0 0.0
      %1141 = vmatprep.subr.mxu0 0.0
      %1142 = vmatpush1.msra.mxu0 0.0
      %1143 = vmatprep.mubr.f32.mxu0 0.0
      %1144 = vmatmul.mubr.f32.gmra.mrb[0].mxu0 %v1077
      %v1145 = vpop.f32.mrb[0].mxu0
      %v1146 = vadd.f32 0.0, %v1145
      %v1147 = vpop.f32.mrb[0].mxu0
      %1148 = vdwg.mxu0
      %v1149 = vld [vmem:[#allocation3] sm:$0xff]
      %v1150 = vld [vmem:[#allocation3 + $0x8] sm:$0xff]
      %1152 = vset.pattern.permute.xlu0 0
      %1153 = vperm.xlu0 %1152, %v961
      %v1154 = vpop.permute.xlu0 %1153
      %1157 = vset.pattern.permute.xlu0 0
      %1158 = vperm.xlu0 %1157, %v963
      %v1159 = vpop.permute.xlu0 %1158
      %v1161 = vmul.f32 %v1154, %v1149
      %v1162 = vmul.f32 %v1159, %v1150
      %1165 = vrot.lane.b32.xlu0 %v1069, 8
      %v1166 = vpop.permute.xlu0 %1165
      %1167 = vrot.lane.b32.xlu0 %v1146, 8
      %v1168 = vpop.permute.xlu0 %1167
      %v1171 = vadd.f32 %v1161, %v1166
      %v1172 = vadd.f32 %v1162, %v1168
      %vm1173 = vcmask 130112
      %1174 = vst.msk [vmem:[#allocation3] sm:$0xff] %vm1173, %v1171
      %1175 = vst.msk [vmem:[#allocation3 + $0x8] sm:$0xff] %vm1173, %v1172
      %1176 = vst.msk [vmem:[%s947] sm:$0xff] %vm618, %v956
      %1177 = vst.msk [vmem:[%s947 + $0x8] sm:$0xff] %vm618, %v957
      %v1178 = vld [vmem:[#allocation2] sm:$0xff]
      %v1179 = vld [vmem:[#allocation2 + $0x8] sm:$0xff]
      %1181 = vrot.lane.b32.xlu0 %v1178, 112
      %v1182 = vpop.permute.xlu0 %1181
      %1183 = vrot.lane.b32.xlu0 %v322, 112
      %v1184 = vpop.permute.xlu0 %1183
      %v1185 = vsel %vm421, %v1182, 0
      %v1187 = vsel %vm421, %v1184, 0
      %1189 = vmatprep.subr.mxu0 0.0
      %1190 = vmatpush1.xpose.msra.mxu0 %v1187
      %1191 = vmatprep.subr.mxu0 0.0
      %1192 = vmatpush1.xpose.msra.mxu0 0.0
      %1193 = vmatprep.subr.mxu0 0.0
      %1194 = vmatpush1.xpose.msra.mxu0 0.0
      %1195 = vmatprep.subr.mxu0 0.0
      %1196 = vmatpush1.xpose.msra.mxu0 0.0
      %1197 = vmatprep.subr.mxu0 0.0
      %1198 = vmatpush1.xpose.msra.mxu0 0.0
      %1199 = vmatprep.subr.mxu0 0.0
      %1200 = vmatpush1.xpose.msra.mxu0 0.0
      %1201 = vmatprep.subr.mxu0 0.0
      %1202 = vmatpush1.xpose.msra.mxu0 0.0
      %1203 = vmatprep.subr.mxu0 0.0
      %1204 = vmatpush1.xpose.msra.mxu0 0.0
      %1205 = vmatprep.subr.mxu0 0.0
      %1206 = vmatpush1.xpose.msra.mxu0 0.0
      %1207 = vmatprep.subr.mxu0 0.0
      %1208 = vmatpush1.xpose.msra.mxu0 0.0
      %1209 = vmatprep.subr.mxu0 0.0
      %1210 = vmatpush1.xpose.msra.mxu0 0.0
      %1211 = vmatprep.subr.mxu0 0.0
      %1212 = vmatpush1.xpose.msra.mxu0 0.0
      %1213 = vmatprep.subr.mxu0 0.0
      %1214 = vmatpush1.xpose.msra.mxu0 0.0
      %1215 = vmatprep.subr.mxu0 0.0
      %1216 = vmatpush1.xpose.msra.mxu0 0.0
      %1217 = vmatprep.subr.mxu0 0.0
      %1218 = vmatpush1.xpose.msra.mxu0 0.0
      %1219 = vmatprep.subr.mxu0 0.0
      %1220 = vmatpush1.xpose.msra.mxu0 0.0
      %1221 = vmatprep.subr.mxu0 0.0
      %1222 = vmatpush1.xpose.msra.mxu0 0.0
      %1223 = vmatprep.subr.mxu0 0.0
      %1224 = vmatpush1.xpose.msra.mxu0 0.0
      %1225 = vmatprep.subr.mxu0 0.0
      %1226 = vmatpush1.xpose.msra.mxu0 0.0
      %1227 = vmatprep.subr.mxu0 0.0
      %1228 = vmatpush1.xpose.msra.mxu0 0.0
      %1229 = vmatprep.subr.mxu0 0.0
      %1230 = vmatpush1.xpose.msra.mxu0 0.0
      %1231 = vmatprep.subr.mxu0 0.0
      %1232 = vmatpush1.xpose.msra.mxu0 0.0
      %1233 = vmatprep.subr.mxu0 0.0
      %1234 = vmatpush1.xpose.msra.mxu0 0.0
      %1235 = vmatprep.subr.mxu0 0.0
      %1236 = vmatpush1.xpose.msra.mxu0 0.0
      %1237 = vmatprep.subr.mxu0 0.0
      %1238 = vmatpush1.xpose.msra.mxu0 0.0
      %1239 = vmatprep.subr.mxu0 0.0
      %1240 = vmatpush1.xpose.msra.mxu0 0.0
      %1241 = vmatprep.subr.mxu0 0.0
      %1242 = vmatpush1.xpose.msra.mxu0 0.0
      %1243 = vmatprep.subr.mxu0 0.0
      %1244 = vmatpush1.xpose.msra.mxu0 0.0
      %1245 = vmatprep.subr.mxu0 0.0
      %1246 = vmatpush1.xpose.msra.mxu0 0.0
      %1247 = vmatprep.subr.mxu0 0.0
      %1248 = vmatpush1.xpose.msra.mxu0 0.0
      %1249 = vmatprep.subr.mxu0 0.0
      %1250 = vmatpush1.xpose.msra.mxu0 0.0
      %1251 = vmatprep.subr.mxu0 0.0
      %1252 = vmatpush1.xpose.msra.mxu0 0.0
      %1253 = vmatprep.mubr.f32.mxu0 0.0
      %1254 = vmatmul.mubr.f32.gmra.mrb[0].mxu0 %v1185
      %v1255 = vpop.f32.mrb[0].mxu0
      %v1256 = vadd.f32 %v418, %v1255
      %v1257 = vpop.f32.mrb[0].mxu0
      %1258 = vdwg.mxu0
      %1260 = vrot.lane.b32.xlu0 %v1179, 112
      %v1261 = vpop.permute.xlu0 %1260
      %1262 = vrot.lane.b32.xlu0 %v327, 112
      %v1263 = vpop.permute.xlu0 %1262
      %v1264 = vsel %vm421, %v1261, 0
      %v1266 = vsel %vm421, %v1263, 0
      %1268 = vmatprep.subr.mxu0 0.0
      %1269 = vmatpush1.xpose.msra.mxu0 %v1266
      %1270 = vmatprep.subr.mxu0 0.0
      %1271 = vmatpush1.xpose.msra.mxu0 0.0
      %1272 = vmatprep.subr.mxu0 0.0
      %1273 = vmatpush1.xpose.msra.mxu0 0.0
      %1274 = vmatprep.subr.mxu0 0.0
      %1275 = vmatpush1.xpose.msra.mxu0 0.0
      %1276 = vmatprep.subr.mxu0 0.0
      %1277 = vmatpush1.xpose.msra.mxu0 0.0
      %1278 = vmatprep.subr.mxu0 0.0
      %1279 = vmatpush1.xpose.msra.mxu0 0.0
      %1280 = vmatprep.subr.mxu0 0.0
      %1281 = vmatpush1.xpose.msra.mxu0 0.0
      %1282 = vmatprep.subr.mxu0 0.0
      %1283 = vmatpush1.xpose.msra.mxu0 0.0
      %1284 = vmatprep.subr.mxu0 0.0
      %1285 = vmatpush1.xpose.msra.mxu0 0.0
      %1286 = vmatprep.subr.mxu0 0.0
      %1287 = vmatpush1.xpose.msra.mxu0 0.0
      %1288 = vmatprep.subr.mxu0 0.0
      %1289 = vmatpush1.xpose.msra.mxu0 0.0
      %1290 = vmatprep.subr.mxu0 0.0
      %1291 = vmatpush1.xpose.msra.mxu0 0.0
      %1292 = vmatprep.subr.mxu0 0.0
      %1293 = vmatpush1.xpose.msra.mxu0 0.0
      %1294 = vmatprep.subr.mxu0 0.0
      %1295 = vmatpush1.xpose.msra.mxu0 0.0
      %1296 = vmatprep.subr.mxu0 0.0
      %1297 = vmatpush1.xpose.msra.mxu0 0.0
      %1298 = vmatprep.subr.mxu0 0.0
      %1299 = vmatpush1.xpose.msra.mxu0 0.0
      %1300 = vmatprep.subr.mxu0 0.0
      %1301 = vmatpush1.xpose.msra.mxu0 0.0
      %1302 = vmatprep.subr.mxu0 0.0
      %1303 = vmatpush1.xpose.msra.mxu0 0.0
      %1304 = vmatprep.subr.mxu0 0.0
      %1305 = vmatpush1.xpose.msra.mxu0 0.0
      %1306 = vmatprep.subr.mxu0 0.0
      %1307 = vmatpush1.xpose.msra.mxu0 0.0
      %1308 = vmatprep.subr.mxu0 0.0
      %1309 = vmatpush1.xpose.msra.mxu0 0.0
      %1310 = vmatprep.subr.mxu0 0.0
      %1311 = vmatpush1.xpose.msra.mxu0 0.0
      %1312 = vmatprep.subr.mxu0 0.0
      %1313 = vmatpush1.xpose.msra.mxu0 0.0
      %1314 = vmatprep.subr.mxu0 0.0
      %1315 = vmatpush1.xpose.msra.mxu0 0.0
      %1316 = vmatprep.subr.mxu0 0.0
      %1317 = vmatpush1.xpose.msra.mxu0 0.0
      %1318 = vmatprep.subr.mxu0 0.0
      %1319 = vmatpush1.xpose.msra.mxu0 0.0
      %1320 = vmatprep.subr.mxu0 0.0
      %1321 = vmatpush1.xpose.msra.mxu0 0.0
      %1322 = vmatprep.subr.mxu0 0.0
      %1323 = vmatpush1.xpose.msra.mxu0 0.0
      %1324 = vmatprep.subr.mxu0 0.0
      %1325 = vmatpush1.xpose.msra.mxu0 0.0
      %1326 = vmatprep.subr.mxu0 0.0
      %1327 = vmatpush1.xpose.msra.mxu0 0.0
      %1328 = vmatprep.subr.mxu0 0.0
      %1329 = vmatpush1.xpose.msra.mxu0 0.0
      %1330 = vmatprep.subr.mxu0 0.0
      %1331 = vmatpush1.xpose.msra.mxu0 0.0
      %1332 = vmatprep.mubr.f32.mxu0 0.0
      %1333 = vmatmul.mubr.f32.gmra.mrb[0].mxu0 %v1264
      %v1334 = vpop.f32.mrb[0].mxu0
      %v1335 = vadd.f32 %v418, %v1334
      %v1336 = vpop.f32.mrb[0].mxu0
      %1337 = vdwg.mxu0
      %s1338 = scalar_lea.vmem [#allocation4], 32
      %v1339 = vld [vmem:[%s1338] sm:$0xff]
      %v1340 = vld [vmem:[%s1338 + $0x8] sm:$0xff]
      %v1341 = vsel %vm421, %v1256, -inf
      %1342 = vmax.xlane.f32.xlu0 %v1341
      %v1343 = vpop.xlane.xlu0 %1342
      %v1344 = vsel %vm421, %v1335, -inf
      %1345 = vmax.xlane.f32.xlu0 %v1344
      %v1346 = vpop.xlane.xlu0 %1345
      %v1347 = vmax.f32 %v1339, %v1343
      %v1348 = vmax.f32 %v1340, %v1346
      %v1349 = vsub.f32 %v1339, %v1347
      %v1350 = vsub.f32 %v1340, %v1348
      %v1351 = vmul.f32 %v1349, 1.442695
      %v1352 = vpow.pop %v1351
      %v1353 = vmul.f32 %v1350, 1.442695
      %v1354 = vpow.pop %v1353
      %1356 = vset.pattern.permute.xlu0 0
      %1357 = vperm.xlu0 %1356, %v1347
      %v1358 = vpop.permute.xlu0 %1357
      %1361 = vset.pattern.permute.xlu0 0
      %1362 = vperm.xlu0 %1361, %v1348
      %v1363 = vpop.permute.xlu0 %1362
      %v1365 = vsub.f32 %v1256, %v1358
      %v1366 = vsub.f32 %v1335, %v1363
      %v1367 = vmul.f32 %v1365, 1.442695
      %v1368 = vpow.pop %v1367
      %v1369 = vmul.f32 %v1366, 1.442695
      %v1370 = vpow.pop %v1369
      %s1371 = scalar_lea.vmem [#allocation5], 32
      %v1372 = vld [vmem:[%s1371] sm:$0xff]
      %v1373 = vld [vmem:[%s1371 + $0x8] sm:$0xff]
      %v1374 = vmul.f32 %v1352, %v1372
      %v1375 = vmul.f32 %v1354, %v1373
      %v1376 = vsel %vm421, %v1368, 0.0
      %1377 = vadd.xlane.f32.xlu0 %v1376
      %v1378 = vpop.xlane.xlu0 %1377
      %v1379 = vsel %vm421, %v1370, 0.0
      %1380 = vadd.xlane.f32.xlu0 %v1379
      %v1381 = vpop.xlane.xlu0 %1380
      %v1382 = vadd.f32 %v1374, %v1378
      %v1383 = vadd.f32 %v1375, %v1381
      %1384 = vst.msk [vmem:[%s1371] sm:$0xff] %vm618, %v1382
      %1385 = vst.msk [vmem:[%s1371 + $0x8] sm:$0xff] %vm618, %v1383
      %1386 = vrot.lane.b32.xlu0 %v401, 112
      %v1387 = vpop.permute.xlu0 %1386
      %v1390 = vsel %vm421, %v1368, 0
      %1392 = vmatprep.subr.mxu0 0.0
      %1393 = vmatpush1.msra.mxu0 %v1387
      %1394 = vmatprep.subr.mxu0 0.0
      %1395 = vmatpush1.msra.mxu0 0.0
      %1396 = vmatprep.subr.mxu0 0.0
      %1397 = vmatpush1.msra.mxu0 0.0
      %1398 = vmatprep.subr.mxu0 0.0
      %1399 = vmatpush1.msra.mxu0 0.0
      %1400 = vmatprep.subr.mxu0 0.0
      %1401 = vmatpush1.msra.mxu0 0.0
      %1402 = vmatprep.subr.mxu0 0.0
      %1403 = vmatpush1.msra.mxu0 0.0
      %1404 = vmatprep.subr.mxu0 0.0
      %1405 = vmatpush1.msra.mxu0 0.0
      %1406 = vmatprep.subr.mxu0 0.0
      %1407 = vmatpush1.msra.mxu0 0.0
      %1408 = vmatprep.subr.mxu0 0.0
      %1409 = vmatpush1.msra.mxu0 0.0
      %1410 = vmatprep.subr.mxu0 0.0
      %1411 = vmatpush1.msra.mxu0 0.0
      %1412 = vmatprep.subr.mxu0 0.0
      %1413 = vmatpush1.msra.mxu0 0.0
      %1414 = vmatprep.subr.mxu0 0.0
      %1415 = vmatpush1.msra.mxu0 0.0
      %1416 = vmatprep.subr.mxu0 0.0
      %1417 = vmatpush1.msra.mxu0 0.0
      %1418 = vmatprep.subr.mxu0 0.0
      %1419 = vmatpush1.msra.mxu0 0.0
      %1420 = vmatprep.subr.mxu0 0.0
      %1421 = vmatpush1.msra.mxu0 0.0
      %1422 = vmatprep.subr.mxu0 0.0
      %1423 = vmatpush1.msra.mxu0 0.0
      %1424 = vmatprep.subr.mxu0 0.0
      %1425 = vmatpush1.msra.mxu0 0.0
      %1426 = vmatprep.subr.mxu0 0.0
      %1427 = vmatpush1.msra.mxu0 0.0
      %1428 = vmatprep.subr.mxu0 0.0
      %1429 = vmatpush1.msra.mxu0 0.0
      %1430 = vmatprep.subr.mxu0 0.0
      %1431 = vmatpush1.msra.mxu0 0.0
      %1432 = vmatprep.subr.mxu0 0.0
      %1433 = vmatpush1.msra.mxu0 0.0
      %1434 = vmatprep.subr.mxu0 0.0
      %1435 = vmatpush1.msra.mxu0 0.0
      %1436 = vmatprep.subr.mxu0 0.0
      %1437 = vmatpush1.msra.mxu0 0.0
      %1438 = vmatprep.subr.mxu0 0.0
      %1439 = vmatpush1.msra.mxu0 0.0
      %1440 = vmatprep.subr.mxu0 0.0
      %1441 = vmatpush1.msra.mxu0 0.0
      %1442 = vmatprep.subr.mxu0 0.0
      %1443 = vmatpush1.msra.mxu0 0.0
      %1444 = vmatprep.subr.mxu0 0.0
      %1445 = vmatpush1.msra.mxu0 0.0
      %1446 = vmatprep.subr.mxu0 0.0
      %1447 = vmatpush1.msra.mxu0 0.0
      %1448 = vmatprep.subr.mxu0 0.0
      %1449 = vmatpush1.msra.mxu0 0.0
      %1450 = vmatprep.subr.mxu0 0.0
      %1451 = vmatpush1.msra.mxu0 0.0
      %1452 = vmatprep.subr.mxu0 0.0
      %1453 = vmatpush1.msra.mxu0 0.0
      %1454 = vmatprep.subr.mxu0 0.0
      %1455 = vmatpush1.msra.mxu0 0.0
      %1456 = vmatprep.mubr.f32.mxu0 0.0
      %1457 = vmatmul.mubr.f32.gmra.mrb[0].mxu0 %v1390
      %v1458 = vpop.f32.mrb[0].mxu0
      %v1459 = vadd.f32 0.0, %v1458
      %v1460 = vpop.f32.mrb[0].mxu0
      %1461 = vdwg.mxu0
      %1462 = vrot.lane.b32.xlu0 %v406, 112
      %v1463 = vpop.permute.xlu0 %1462
      %v1466 = vsel %vm421, %v1370, 0
      %1468 = vmatprep.subr.mxu0 0.0
      %1469 = vmatpush1.msra.mxu0 %v1463
      %1470 = vmatprep.subr.mxu0 0.0
      %1471 = vmatpush1.msra.mxu0 0.0
      %1472 = vmatprep.subr.mxu0 0.0
      %1473 = vmatpush1.msra.mxu0 0.0
      %1474 = vmatprep.subr.mxu0 0.0
      %1475 = vmatpush1.msra.mxu0 0.0
      %1476 = vmatprep.subr.mxu0 0.0
      %1477 = vmatpush1.msra.mxu0 0.0
      %1478 = vmatprep.subr.mxu0 0.0
      %1479 = vmatpush1.msra.mxu0 0.0
      %1480 = vmatprep.subr.mxu0 0.0
      %1481 = vmatpush1.msra.mxu0 0.0
      %1482 = vmatprep.subr.mxu0 0.0
      %1483 = vmatpush1.msra.mxu0 0.0
      %1484 = vmatprep.subr.mxu0 0.0
      %1485 = vmatpush1.msra.mxu0 0.0
      %1486 = vmatprep.subr.mxu0 0.0
      %1487 = vmatpush1.msra.mxu0 0.0
      %1488 = vmatprep.subr.mxu0 0.0
      %1489 = vmatpush1.msra.mxu0 0.0
      %1490 = vmatprep.subr.mxu0 0.0
      %1491 = vmatpush1.msra.mxu0 0.0
      %1492 = vmatprep.subr.mxu0 0.0
      %1493 = vmatpush1.msra.mxu0 0.0
      %1494 = vmatprep.subr.mxu0 0.0
      %1495 = vmatpush1.msra.mxu0 0.0
      %1496 = vmatprep.subr.mxu0 0.0
      %1497 = vmatpush1.msra.mxu0 0.0
      %1498 = vmatprep.subr.mxu0 0.0
      %1499 = vmatpush1.msra.mxu0 0.0
      %1500 = vmatprep.subr.mxu0 0.0
      %1501 = vmatpush1.msra.mxu0 0.0
      %1502 = vmatprep.subr.mxu0 0.0
      %1503 = vmatpush1.msra.mxu0 0.0
      %1504 = vmatprep.subr.mxu0 0.0
      %1505 = vmatpush1.msra.mxu0 0.0
      %1506 = vmatprep.subr.mxu0 0.0
      %1507 = vmatpush1.msra.mxu0 0.0
      %1508 = vmatprep.subr.mxu0 0.0
      %1509 = vmatpush1.msra.mxu0 0.0
      %1510 = vmatprep.subr.mxu0 0.0
      %1511 = vmatpush1.msra.mxu0 0.0
      %1512 = vmatprep.subr.mxu0 0.0
      %1513 = vmatpush1.msra.mxu0 0.0
      %1514 = vmatprep.subr.mxu0 0.0
      %1515 = vmatpush1.msra.mxu0 0.0
      %1516 = vmatprep.subr.mxu0 0.0
      %1517 = vmatpush1.msra.mxu0 0.0
      %1518 = vmatprep.subr.mxu0 0.0
      %1519 = vmatpush1.msra.mxu0 0.0
      %1520 = vmatprep.subr.mxu0 0.0
      %1521 = vmatpush1.msra.mxu0 0.0
      %1522 = vmatprep.subr.mxu0 0.0
      %1523 = vmatpush1.msra.mxu0 0.0
      %1524 = vmatprep.subr.mxu0 0.0
      %1525 = vmatpush1.msra.mxu0 0.0
      %1526 = vmatprep.subr.mxu0 0.0
      %1527 = vmatpush1.msra.mxu0 0.0
      %1528 = vmatprep.subr.mxu0 0.0
      %1529 = vmatpush1.msra.mxu0 0.0
      %1530 = vmatprep.subr.mxu0 0.0
      %1531 = vmatpush1.msra.mxu0 0.0
      %1532 = vmatprep.mubr.f32.mxu0 0.0
      %1533 = vmatmul.mubr.f32.gmra.mrb[0].mxu0 %v1466
      %v1534 = vpop.f32.mrb[0].mxu0
      %v1535 = vadd.f32 0.0, %v1534
      %v1536 = vpop.f32.mrb[0].mxu0
      %1537 = vdwg.mxu0
      %v1538 = vld [vmem:[#allocation3] sm:$0xff]
      %v1539 = vld [vmem:[#allocation3 + $0x8] sm:$0xff]
      %1541 = vset.pattern.permute.xlu0 0
      %1542 = vperm.xlu0 %1541, %v1352
      %v1543 = vpop.permute.xlu0 %1542
      %1546 = vset.pattern.permute.xlu0 0
      %1547 = vperm.xlu0 %1546, %v1354
      %v1548 = vpop.permute.xlu0 %1547
      %v1550 = vmul.f32 %v1543, %v1538
      %v1551 = vmul.f32 %v1548, %v1539
      %1554 = vrot.lane.b32.xlu0 %v1459, 16
      %v1555 = vpop.permute.xlu0 %1554
      %1556 = vrot.lane.b32.xlu0 %v1535, 16
      %v1557 = vpop.permute.xlu0 %1556
      %v1560 = vadd.f32 %v1550, %v1555
      %v1561 = vadd.f32 %v1551, %v1557
      %vm1562 = vcmask 195712
      %1563 = vst.msk [vmem:[#allocation3] sm:$0xff] %vm1562, %v1560
      %1564 = vst.msk [vmem:[#allocation3 + $0x8] sm:$0xff] %vm1562, %v1561
      %1565 = vst.msk [vmem:[%s1338] sm:$0xff] %vm618, %v1347
      %1566 = vst.msk [vmem:[%s1338 + $0x8] sm:$0xff] %vm618, %v1348
      %v1567 = vld [vmem:[#allocation2] sm:$0xff]
      %v1568 = vld [vmem:[#allocation2 + $0x8] sm:$0xff]
      %1570 = vrot.lane.b32.xlu0 %v1567, 104
      %v1571 = vpop.permute.xlu0 %1570
      %1572 = vrot.lane.b32.xlu0 %v322, 104
      %v1573 = vpop.permute.xlu0 %1572
      %v1574 = vsel %vm421, %v1571, 0
      %v1576 = vsel %vm421, %v1573, 0
      %1578 = vmatprep.subr.mxu0 0.0
      %1579 = vmatpush1.xpose.msra.mxu0 %v1576
      %1580 = vmatprep.subr.mxu0 0.0
      %1581 = vmatpush1.xpose.msra.mxu0 0.0
      %1582 = vmatprep.subr.mxu0 0.0
      %1583 = vmatpush1.xpose.msra.mxu0 0.0
      %1584 = vmatprep.subr.mxu0 0.0
      %1585 = vmatpush1.xpose.msra.mxu0 0.0
      %1586 = vmatprep.subr.mxu0 0.0
      %1587 = vmatpush1.xpose.msra.mxu0 0.0
      %1588 = vmatprep.subr.mxu0 0.0
      %1589 = vmatpush1.xpose.msra.mxu0 0.0
      %1590 = vmatprep.subr.mxu0 0.0
      %1591 = vmatpush1.xpose.msra.mxu0 0.0
      %1592 = vmatprep.subr.mxu0 0.0
      %1593 = vmatpush1.xpose.msra.mxu0 0.0
      %1594 = vmatprep.subr.mxu0 0.0
      %1595 = vmatpush1.xpose.msra.mxu0 0.0
      %1596 = vmatprep.subr.mxu0 0.0
      %1597 = vmatpush1.xpose.msra.mxu0 0.0
      %1598 = vmatprep.subr.mxu0 0.0
      %1599 = vmatpush1.xpose.msra.mxu0 0.0
      %1600 = vmatprep.subr.mxu0 0.0
      %1601 = vmatpush1.xpose.msra.mxu0 0.0
      %1602 = vmatprep.subr.mxu0 0.0
      %1603 = vmatpush1.xpose.msra.mxu0 0.0
      %1604 = vmatprep.subr.mxu0 0.0
      %1605 = vmatpush1.xpose.msra.mxu0 0.0
      %1606 = vmatprep.subr.mxu0 0.0
      %1607 = vmatpush1.xpose.msra.mxu0 0.0
      %1608 = vmatprep.subr.mxu0 0.0
      %1609 = vmatpush1.xpose.msra.mxu0 0.0
      %1610 = vmatprep.subr.mxu0 0.0
      %1611 = vmatpush1.xpose.msra.mxu0 0.0
      %1612 = vmatprep.subr.mxu0 0.0
      %1613 = vmatpush1.xpose.msra.mxu0 0.0
      %1614 = vmatprep.subr.mxu0 0.0
      %1615 = vmatpush1.xpose.msra.mxu0 0.0
      %1616 = vmatprep.subr.mxu0 0.0
      %1617 = vmatpush1.xpose.msra.mxu0 0.0
      %1618 = vmatprep.subr.mxu0 0.0
      %1619 = vmatpush1.xpose.msra.mxu0 0.0
      %1620 = vmatprep.subr.mxu0 0.0
      %1621 = vmatpush1.xpose.msra.mxu0 0.0
      %1622 = vmatprep.subr.mxu0 0.0
      %1623 = vmatpush1.xpose.msra.mxu0 0.0
      %1624 = vmatprep.subr.mxu0 0.0
      %1625 = vmatpush1.xpose.msra.mxu0 0.0
      %1626 = vmatprep.subr.mxu0 0.0
      %1627 = vmatpush1.xpose.msra.mxu0 0.0
      %1628 = vmatprep.subr.mxu0 0.0
      %1629 = vmatpush1.xpose.msra.mxu0 0.0
      %1630 = vmatprep.subr.mxu0 0.0
      %1631 = vmatpush1.xpose.msra.mxu0 0.0
      %1632 = vmatprep.subr.mxu0 0.0
      %1633 = vmatpush1.xpose.msra.mxu0 0.0
      %1634 = vmatprep.subr.mxu0 0.0
      %1635 = vmatpush1.xpose.msra.mxu0 0.0
      %1636 = vmatprep.subr.mxu0 0.0
      %1637 = vmatpush1.xpose.msra.mxu0 0.0
      %1638 = vmatprep.subr.mxu0 0.0
      %1639 = vmatpush1.xpose.msra.mxu0 0.0
      %1640 = vmatprep.subr.mxu0 0.0
      %1641 = vmatpush1.xpose.msra.mxu0 0.0
      %1642 = vmatprep.mubr.f32.mxu0 0.0
      %1643 = vmatmul.mubr.f32.gmra.mrb[0].mxu0 %v1574
      %v1644 = vpop.f32.mrb[0].mxu0
      %v1645 = vadd.f32 %v418, %v1644
      %v1646 = vpop.f32.mrb[0].mxu0
      %1647 = vdwg.mxu0
      %1649 = vrot.lane.b32.xlu0 %v1568, 104
      %v1650 = vpop.permute.xlu0 %1649
      %1651 = vrot.lane.b32.xlu0 %v327, 104
      %v1652 = vpop.permute.xlu0 %1651
      %v1653 = vsel %vm421, %v1650, 0
      %v1655 = vsel %vm421, %v1652, 0
      %1657 = vmatprep.subr.mxu0 0.0
      %1658 = vmatpush1.xpose.msra.mxu0 %v1655
      %1659 = vmatprep.subr.mxu0 0.0
      %1660 = vmatpush1.xpose.msra.mxu0 0.0
      %1661 = vmatprep.subr.mxu0 0.0
      %1662 = vmatpush1.xpose.msra.mxu0 0.0
      %1663 = vmatprep.subr.mxu0 0.0
      %1664 = vmatpush1.xpose.msra.mxu0 0.0
      %1665 = vmatprep.subr.mxu0 0.0
      %1666 = vmatpush1.xpose.msra.mxu0 0.0
      %1667 = vmatprep.subr.mxu0 0.0
      %1668 = vmatpush1.xpose.msra.mxu0 0.0
      %1669 = vmatprep.subr.mxu0 0.0
      %1670 = vmatpush1.xpose.msra.mxu0 0.0
      %1671 = vmatprep.subr.mxu0 0.0
      %1672 = vmatpush1.xpose.msra.mxu0 0.0
      %1673 = vmatprep.subr.mxu0 0.0
      %1674 = vmatpush1.xpose.msra.mxu0 0.0
      %1675 = vmatprep.subr.mxu0 0.0
      %1676 = vmatpush1.xpose.msra.mxu0 0.0
      %1677 = vmatprep.subr.mxu0 0.0
      %1678 = vmatpush1.xpose.msra.mxu0 0.0
      %1679 = vmatprep.subr.mxu0 0.0
      %1680 = vmatpush1.xpose.msra.mxu0 0.0
      %1681 = vmatprep.subr.mxu0 0.0
      %1682 = vmatpush1.xpose.msra.mxu0 0.0
      %1683 = vmatprep.subr.mxu0 0.0
      %1684 = vmatpush1.xpose.msra.mxu0 0.0
      %1685 = vmatprep.subr.mxu0 0.0
      %1686 = vmatpush1.xpose.msra.mxu0 0.0
      %1687 = vmatprep.subr.mxu0 0.0
      %1688 = vmatpush1.xpose.msra.mxu0 0.0
      %1689 = vmatprep.subr.mxu0 0.0
      %1690 = vmatpush1.xpose.msra.mxu0 0.0
      %1691 = vmatprep.subr.mxu0 0.0
      %1692 = vmatpush1.xpose.msra.mxu0 0.0
      %1693 = vmatprep.subr.mxu0 0.0
      %1694 = vmatpush1.xpose.msra.mxu0 0.0
      %1695 = vmatprep.subr.mxu0 0.0
      %1696 = vmatpush1.xpose.msra.mxu0 0.0
      %1697 = vmatprep.subr.mxu0 0.0
      %1698 = vmatpush1.xpose.msra.mxu0 0.0
      %1699 = vmatprep.subr.mxu0 0.0
      %1700 = vmatpush1.xpose.msra.mxu0 0.0
      %1701 = vmatprep.subr.mxu0 0.0
      %1702 = vmatpush1.xpose.msra.mxu0 0.0
      %1703 = vmatprep.subr.mxu0 0.0
      %1704 = vmatpush1.xpose.msra.mxu0 0.0
      %1705 = vmatprep.subr.mxu0 0.0
      %1706 = vmatpush1.xpose.msra.mxu0 0.0
      %1707 = vmatprep.subr.mxu0 0.0
      %1708 = vmatpush1.xpose.msra.mxu0 0.0
      %1709 = vmatprep.subr.mxu0 0.0
      %1710 = vmatpush1.xpose.msra.mxu0 0.0
      %1711 = vmatprep.subr.mxu0 0.0
      %1712 = vmatpush1.xpose.msra.mxu0 0.0
      %1713 = vmatprep.subr.mxu0 0.0
      %1714 = vmatpush1.xpose.msra.mxu0 0.0
      %1715 = vmatprep.subr.mxu0 0.0
      %1716 = vmatpush1.xpose.msra.mxu0 0.0
      %1717 = vmatprep.subr.mxu0 0.0
      %1718 = vmatpush1.xpose.msra.mxu0 0.0
      %1719 = vmatprep.subr.mxu0 0.0
      %1720 = vmatpush1.xpose.msra.mxu0 0.0
      %1721 = vmatprep.mubr.f32.mxu0 0.0
      %1722 = vmatmul.mubr.f32.gmra.mrb[0].mxu0 %v1653
      %v1723 = vpop.f32.mrb[0].mxu0
      %v1724 = vadd.f32 %v418, %v1723
      %v1725 = vpop.f32.mrb[0].mxu0
      %1726 = vdwg.mxu0
      %s1727 = scalar_lea.vmem [#allocation4], 48
      %v1728 = vld [vmem:[%s1727] sm:$0xff]
      %v1729 = vld [vmem:[%s1727 + $0x8] sm:$0xff]
      %v1730 = vsel %vm421, %v1645, -inf
      %1731 = vmax.xlane.f32.xlu0 %v1730
      %v1732 = vpop.xlane.xlu0 %1731
      %v1733 = vsel %vm421, %v1724, -inf
      %1734 = vmax.xlane.f32.xlu0 %v1733
      %v1735 = vpop.xlane.xlu0 %1734
      %v1736 = vmax.f32 %v1728, %v1732
      %v1737 = vmax.f32 %v1729, %v1735
      %v1738 = vsub.f32 %v1728, %v1736
      %v1739 = vsub.f32 %v1729, %v1737
      %v1740 = vmul.f32 %v1738, 1.442695
      %v1741 = vpow.pop %v1740
      %v1742 = vmul.f32 %v1739, 1.442695
      %v1743 = vpow.pop %v1742
      %1745 = vset.pattern.permute.xlu0 0
      %1746 = vperm.xlu0 %1745, %v1736
      %v1747 = vpop.permute.xlu0 %1746
      %1750 = vset.pattern.permute.xlu0 0
      %1751 = vperm.xlu0 %1750, %v1737
      %v1752 = vpop.permute.xlu0 %1751
      %v1754 = vsub.f32 %v1645, %v1747
      %v1755 = vsub.f32 %v1724, %v1752
      %v1756 = vmul.f32 %v1754, 1.442695
      %v1757 = vpow.pop %v1756
      %v1758 = vmul.f32 %v1755, 1.442695
      %v1759 = vpow.pop %v1758
      %s1760 = scalar_lea.vmem [#allocation5], 48
      %v1761 = vld [vmem:[%s1760] sm:$0xff]
      %v1762 = vld [vmem:[%s1760 + $0x8] sm:$0xff]
      %v1763 = vmul.f32 %v1741, %v1761
      %v1764 = vmul.f32 %v1743, %v1762
      %v1765 = vsel %vm421, %v1757, 0.0
      %1766 = vadd.xlane.f32.xlu0 %v1765
      %v1767 = vpop.xlane.xlu0 %1766
      %v1768 = vsel %vm421, %v1759, 0.0
      %1769 = vadd.xlane.f32.xlu0 %v1768
      %v1770 = vpop.xlane.xlu0 %1769
      %v1771 = vadd.f32 %v1763, %v1767
      %v1772 = vadd.f32 %v1764, %v1770
      %1773 = vst.msk [vmem:[%s1760] sm:$0xff] %vm618, %v1771
      %1774 = vst.msk [vmem:[%s1760 + $0x8] sm:$0xff] %vm618, %v1772
      %1775 = vrot.lane.b32.xlu0 %v401, 104
      %v1776 = vpop.permute.xlu0 %1775
      %v1779 = vsel %vm421, %v1757, 0
      %1781 = vmatprep.subr.mxu0 0.0
      %1782 = vmatpush1.msra.mxu0 %v1776
      %1783 = vmatprep.subr.mxu0 0.0
      %1784 = vmatpush1.msra.mxu0 0.0
      %1785 = vmatprep.subr.mxu0 0.0
      %1786 = vmatpush1.msra.mxu0 0.0
      %1787 = vmatprep.subr.mxu0 0.0
      %1788 = vmatpush1.msra.mxu0 0.0
      %1789 = vmatprep.subr.mxu0 0.0
      %1790 = vmatpush1.msra.mxu0 0.0
      %1791 = vmatprep.subr.mxu0 0.0
      %1792 = vmatpush1.msra.mxu0 0.0
      %1793 = vmatprep.subr.mxu0 0.0
      %1794 = vmatpush1.msra.mxu0 0.0
      %1795 = vmatprep.subr.mxu0 0.0
      %1796 = vmatpush1.msra.mxu0 0.0
      %1797 = vmatprep.subr.mxu0 0.0
      %1798 = vmatpush1.msra.mxu0 0.0
      %1799 = vmatprep.subr.mxu0 0.0
      %1800 = vmatpush1.msra.mxu0 0.0
      %1801 = vmatprep.subr.mxu0 0.0
      %1802 = vmatpush1.msra.mxu0 0.0
      %1803 = vmatprep.subr.mxu0 0.0
      %1804 = vmatpush1.msra.mxu0 0.0
      %1805 = vmatprep.subr.mxu0 0.0
      %1806 = vmatpush1.msra.mxu0 0.0
      %1807 = vmatprep.subr.mxu0 0.0
      %1808 = vmatpush1.msra.mxu0 0.0
      %1809 = vmatprep.subr.mxu0 0.0
      %1810 = vmatpush1.msra.mxu0 0.0
      %1811 = vmatprep.subr.mxu0 0.0
      %1812 = vmatpush1.msra.mxu0 0.0
      %1813 = vmatprep.subr.mxu0 0.0
      %1814 = vmatpush1.msra.mxu0 0.0
      %1815 = vmatprep.subr.mxu0 0.0
      %1816 = vmatpush1.msra.mxu0 0.0
      %1817 = vmatprep.subr.mxu0 0.0
      %1818 = vmatpush1.msra.mxu0 0.0
      %1819 = vmatprep.subr.mxu0 0.0
      %1820 = vmatpush1.msra.mxu0 0.0
      %1821 = vmatprep.subr.mxu0 0.0
      %1822 = vmatpush1.msra.mxu0 0.0
      %1823 = vmatprep.subr.mxu0 0.0
      %1824 = vmatpush1.msra.mxu0 0.0
      %1825 = vmatprep.subr.mxu0 0.0
      %1826 = vmatpush1.msra.mxu0 0.0
      %1827 = vmatprep.subr.mxu0 0.0
      %1828 = vmatpush1.msra.mxu0 0.0
      %1829 = vmatprep.subr.mxu0 0.0
      %1830 = vmatpush1.msra.mxu0 0.0
      %1831 = vmatprep.subr.mxu0 0.0
      %1832 = vmatpush1.msra.mxu0 0.0
      %1833 = vmatprep.subr.mxu0 0.0
      %1834 = vmatpush1.msra.mxu0 0.0
      %1835 = vmatprep.subr.mxu0 0.0
      %1836 = vmatpush1.msra.mxu0 0.0
      %1837 = vmatprep.subr.mxu0 0.0
      %1838 = vmatpush1.msra.mxu0 0.0
      %1839 = vmatprep.subr.mxu0 0.0
      %1840 = vmatpush1.msra.mxu0 0.0
      %1841 = vmatprep.subr.mxu0 0.0
      %1842 = vmatpush1.msra.mxu0 0.0
      %1843 = vmatprep.subr.mxu0 0.0
      %1844 = vmatpush1.msra.mxu0 0.0
      %1845 = vmatprep.mubr.f32.mxu0 0.0
      %1846 = vmatmul.mubr.f32.gmra.mrb[0].mxu0 %v1779
      %v1847 = vpop.f32.mrb[0].mxu0
      %v1848 = vadd.f32 0.0, %v1847
      %v1849 = vpop.f32.mrb[0].mxu0
      %1850 = vdwg.mxu0
      %1851 = vrot.lane.b32.xlu0 %v406, 104
      %v1852 = vpop.permute.xlu0 %1851
      %v1855 = vsel %vm421, %v1759, 0
      %1857 = vmatprep.subr.mxu0 0.0
      %1858 = vmatpush1.msra.mxu0 %v1852
      %1859 = vmatprep.subr.mxu0 0.0
      %1860 = vmatpush1.msra.mxu0 0.0
      %1861 = vmatprep.subr.mxu0 0.0
      %1862 = vmatpush1.msra.mxu0 0.0
      %1863 = vmatprep.subr.mxu0 0.0
      %1864 = vmatpush1.msra.mxu0 0.0
      %1865 = vmatprep.subr.mxu0 0.0
      %1866 = vmatpush1.msra.mxu0 0.0
      %1867 = vmatprep.subr.mxu0 0.0
      %1868 = vmatpush1.msra.mxu0 0.0
      %1869 = vmatprep.subr.mxu0 0.0
      %1870 = vmatpush1.msra.mxu0 0.0
      %1871 = vmatprep.subr.mxu0 0.0
      %1872 = vmatpush1.msra.mxu0 0.0
      %1873 = vmatprep.subr.mxu0 0.0
      %1874 = vmatpush1.msra.mxu0 0.0
      %1875 = vmatprep.subr.mxu0 0.0
      %1876 = vmatpush1.msra.mxu0 0.0
      %1877 = vmatprep.subr.mxu0 0.0
      %1878 = vmatpush1.msra.mxu0 0.0
      %1879 = vmatprep.subr.mxu0 0.0
      %1880 = vmatpush1.msra.mxu0 0.0
      %1881 = vmatprep.subr.mxu0 0.0
      %1882 = vmatpush1.msra.mxu0 0.0
      %1883 = vmatprep.subr.mxu0 0.0
      %1884 = vmatpush1.msra.mxu0 0.0
      %1885 = vmatprep.subr.mxu0 0.0
      %1886 = vmatpush1.msra.mxu0 0.0
      %1887 = vmatprep.subr.mxu0 0.0
      %1888 = vmatpush1.msra.mxu0 0.0
      %1889 = vmatprep.subr.mxu0 0.0
      %1890 = vmatpush1.msra.mxu0 0.0
      %1891 = vmatprep.subr.mxu0 0.0
      %1892 = vmatpush1.msra.mxu0 0.0
      %1893 = vmatprep.subr.mxu0 0.0
      %1894 = vmatpush1.msra.mxu0 0.0
      %1895 = vmatprep.subr.mxu0 0.0
      %1896 = vmatpush1.msra.mxu0 0.0
      %1897 = vmatprep.subr.mxu0 0.0
      %1898 = vmatpush1.msra.mxu0 0.0
      %1899 = vmatprep.subr.mxu0 0.0
      %1900 = vmatpush1.msra.mxu0 0.0
      %1901 = vmatprep.subr.mxu0 0.0
      %1902 = vmatpush1.msra.mxu0 0.0
      %1903 = vmatprep.subr.mxu0 0.0
      %1904 = vmatpush1.msra.mxu0 0.0
      %1905 = vmatprep.subr.mxu0 0.0
      %1906 = vmatpush1.msra.mxu0 0.0
      %1907 = vmatprep.subr.mxu0 0.0
      %1908 = vmatpush1.msra.mxu0 0.0
      %1909 = vmatprep.subr.mxu0 0.0
      %1910 = vmatpush1.msra.mxu0 0.0
      %1911 = vmatprep.subr.mxu0 0.0
      %1912 = vmatpush1.msra.mxu0 0.0
      %1913 = vmatprep.subr.mxu0 0.0
      %1914 = vmatpush1.msra.mxu0 0.0
      %1915 = vmatprep.subr.mxu0 0.0
      %1916 = vmatpush1.msra.mxu0 0.0
      %1917 = vmatprep.subr.mxu0 0.0
      %1918 = vmatpush1.msra.mxu0 0.0
      %1919 = vmatprep.subr.mxu0 0.0
      %1920 = vmatpush1.msra.mxu0 0.0
      %1921 = vmatprep.mubr.f32.mxu0 0.0
      %1922 = vmatmul.mubr.f32.gmra.mrb[0].mxu0 %v1855
      %v1923 = vpop.f32.mrb[0].mxu0
      %v1924 = vadd.f32 0.0, %v1923
      %v1925 = vpop.f32.mrb[0].mxu0
      %1926 = vdwg.mxu0
      %v1927 = vld [vmem:[#allocation3] sm:$0xff]
      %v1928 = vld [vmem:[#allocation3 + $0x8] sm:$0xff]
      %1930 = vset.pattern.permute.xlu0 0
      %1931 = vperm.xlu0 %1930, %v1741
      %v1932 = vpop.permute.xlu0 %1931
      %1935 = vset.pattern.permute.xlu0 0
      %1936 = vperm.xlu0 %1935, %v1743
      %v1937 = vpop.permute.xlu0 %1936
      %v1939 = vmul.f32 %v1932, %v1927
      %v1940 = vmul.f32 %v1937, %v1928
      %1943 = vrot.lane.b32.xlu0 %v1848, 24
      %v1944 = vpop.permute.xlu0 %1943
      %1945 = vrot.lane.b32.xlu0 %v1924, 24
      %v1946 = vpop.permute.xlu0 %1945
      %v1949 = vadd.f32 %v1939, %v1944
      %v1950 = vadd.f32 %v1940, %v1946
      %vm1951 = vcmask 261312
      %1952 = vst.msk [vmem:[#allocation3] sm:$0xff] %vm1951, %v1949
      %1953 = vst.msk [vmem:[#allocation3 + $0x8] sm:$0xff] %vm1951, %v1950
      %1954 = vst.msk [vmem:[%s1727] sm:$0xff] %vm618, %v1736
      %1955 = vst.msk [vmem:[%s1727 + $0x8] sm:$0xff] %vm618, %v1737
    $region65: #{tpu_custom_call.1} parent=1 // pred_fallthru
      _
    // Predicated region
    $region66: #{tpu_custom_call.1} parent=1 // pred_check
      %p1956 = pneg %p122
    $region67: #{tpu_custom_call.1} parent=1 // pred_check_branch
      %1958 = sbr.rel (%p1956) target = $region69
    $region68: #{tpu_custom_call.1} parent=1 // pred_region
      %v1959 = vld [vmem:[#allocation5] sm:$0xff]
      %v1960 = vld [vmem:[#allocation5 + $0x8] sm:$0xff]
      %v1961 = vrcp.pop %v1959
      %v1962 = vrcp.pop %v1960
      %v1963 = vld [vmem:[#allocation3] sm:$0xff]
      %v1964 = vld [vmem:[#allocation3 + $0x8] sm:$0xff]
      %1966 = vset.pattern.permute.xlu0 0
      %1967 = vperm.xlu0 %1966, %v1961
      %v1968 = vpop.permute.xlu0 %1967
      %1971 = vset.pattern.permute.xlu0 0
      %1972 = vperm.xlu0 %1971, %v1962
      %v1973 = vpop.permute.xlu0 %1972
      %v1975 = vmul.f32 %v1963, %v1968
      %v1976 = vmul.f32 %v1964, %v1973
      %vm1977 = vcmask 64512
      %1978 = vst.msk [vmem:[#allocation3] sm:$0xff] %vm1977, %v1975
      %1979 = vst.msk [vmem:[#allocation3 + $0x8] sm:$0xff] %vm1977, %v1976
      %s1980 = scalar_lea.vmem [#allocation5], 16
      %v1981 = vld [vmem:[%s1980] sm:$0xff]
      %v1982 = vld [vmem:[%s1980 + $0x8] sm:$0xff]
      %v1983 = vrcp.pop %v1981
      %v1984 = vrcp.pop %v1982
      %v1985 = vld [vmem:[#allocation3] sm:$0xff]
      %v1986 = vld [vmem:[#allocation3 + $0x8] sm:$0xff]
      %1988 = vset.pattern.permute.xlu0 0
      %1989 = vperm.xlu0 %1988, %v1983
      %v1990 = vpop.permute.xlu0 %1989
      %1993 = vset.pattern.permute.xlu0 0
      %1994 = vperm.xlu0 %1993, %v1984
      %v1995 = vpop.permute.xlu0 %1994
      %v1997 = vmul.f32 %v1985, %v1990
      %v1998 = vmul.f32 %v1986, %v1995
      %vm1999 = vcmask 130112
      %2000 = vst.msk [vmem:[#allocation3] sm:$0xff] %vm1999, %v1997
      %2001 = vst.msk [vmem:[#allocation3 + $0x8] sm:$0xff] %vm1999, %v1998
      %s2002 = scalar_lea.vmem [#allocation5], 32
      %v2003 = vld [vmem:[%s2002] sm:$0xff]
      %v2004 = vld [vmem:[%s2002 + $0x8] sm:$0xff]
      %v2005 = vrcp.pop %v2003
      %v2006 = vrcp.pop %v2004
      %v2007 = vld [vmem:[#allocation3] sm:$0xff]
      %v2008 = vld [vmem:[#allocation3 + $0x8] sm:$0xff]
      %2010 = vset.pattern.permute.xlu0 0
      %2011 = vperm.xlu0 %2010, %v2005
      %v2012 = vpop.permute.xlu0 %2011
      %2015 = vset.pattern.permute.xlu0 0
      %2016 = vperm.xlu0 %2015, %v2006
      %v2017 = vpop.permute.xlu0 %2016
      %v2019 = vmul.f32 %v2007, %v2012
      %v2020 = vmul.f32 %v2008, %v2017
      %vm2021 = vcmask 195712
      %2022 = vst.msk [vmem:[#allocation3] sm:$0xff] %vm2021, %v2019
      %2023 = vst.msk [vmem:[#allocation3 + $0x8] sm:$0xff] %vm2021, %v2020
      %s2024 = scalar_lea.vmem [#allocation5], 48
      %v2025 = vld [vmem:[%s2024] sm:$0xff]
      %v2026 = vld [vmem:[%s2024 + $0x8] sm:$0xff]
      %v2027 = vrcp.pop %v2025
      %v2028 = vrcp.pop %v2026
      %v2029 = vld [vmem:[#allocation3] sm:$0xff]
      %v2030 = vld [vmem:[#allocation3 + $0x8] sm:$0xff]
      %2032 = vset.pattern.permute.xlu0 0
      %2033 = vperm.xlu0 %2032, %v2027
      %v2034 = vpop.permute.xlu0 %2033
      %2037 = vset.pattern.permute.xlu0 0
      %2038 = vperm.xlu0 %2037, %v2028
      %v2039 = vpop.permute.xlu0 %2038
      %v2041 = vmul.f32 %v2029, %v2034
      %v2042 = vmul.f32 %v2030, %v2039
      %vm2043 = vcmask 261312
      %2044 = vst.msk [vmem:[#allocation3] sm:$0xff] %vm2043, %v2041
      %2045 = vst.msk [vmem:[#allocation3 + $0x8] sm:$0xff] %vm2043, %v2042
      %v2046 = vld [vmem:[#allocation3] sm:$0xff]
      %v2047 = vld [vmem:[#allocation3 + $0x8] sm:$0xff]
      %v2048 = vld [vmem:[#allocation15] sm:$0xff]
      %v2049 = vld [vmem:[#allocation15 + $0x8] sm:$0xff]
      %v2050 = vld [vmem:[#allocation15 + $0x10] sm:$0xff]
      %v2051 = vld [vmem:[#allocation15 + $0x18] sm:$0xff]
      %v2052 = vld [vmem:[#allocation17] sm:$0x1]
      %v2054 = vlaneseq
      %v2055 = vshrl.u32 %v2054, 7
      %v2056 = vsub.s32 0, %v2055
      %v2057 = vrot.slane %v2052, %v2056
      %vm2059 = vcmask 261120
      %v2061 = vsel %vm2059, %v2046, 0
      %v2064 = vsel %vm2059, %v2047, 0
      %2066 = vmatprep.subr.mxu0 0.0
      %2067 = vmatpush1.msra.mxu0 %v2048
      %2068 = vmatprep.subr.mxu0 0.0
      %2069 = vmatpush1.msra.mxu0 %v2049
      %2070 = vmatprep.subr.mxu0 0.0
      %2071 = vmatpush1.msra.mxu0 %v2050
      %2072 = vmatprep.subr.mxu0 0.0
      %2073 = vmatpush1.msra.mxu0 %v2051
      %2074 = vmatprep.subr.mxu0 0.0
      %2075 = vmatpush1.msra.mxu0 0.0
      %2076 = vmatprep.subr.mxu0 0.0
      %2077 = vmatpush1.msra.mxu0 0.0
      %2078 = vmatprep.subr.mxu0 0.0
      %2079 = vmatpush1.msra.mxu0 0.0
      %2080 = vmatprep.subr.mxu0 0.0
      %2081 = vmatpush1.msra.mxu0 0.0
      %2082 = vmatprep.subr.mxu0 0.0
      %2083 = vmatpush1.msra.mxu0 0.0
      %2084 = vmatprep.subr.mxu0 0.0
      %2085 = vmatpush1.msra.mxu0 0.0
      %2086 = vmatprep.subr.mxu0 0.0
      %2087 = vmatpush1.msra.mxu0 0.0
      %2088 = vmatprep.subr.mxu0 0.0
      %2089 = vmatpush1.msra.mxu0 0.0
      %2090 = vmatprep.subr.mxu0 0.0
      %2091 = vmatpush1.msra.mxu0 0.0
      %2092 = vmatprep.subr.mxu0 0.0
      %2093 = vmatpush1.msra.mxu0 0.0
      %2094 = vmatprep.subr.mxu0 0.0
      %2095 = vmatpush1.msra.mxu0 0.0
      %2096 = vmatprep.subr.mxu0 0.0
      %2097 = vmatpush1.msra.mxu0 0.0
      %2098 = vmatprep.subr.mxu0 0.0
      %2099 = vmatpush1.msra.mxu0 0.0
      %2100 = vmatprep.subr.mxu0 0.0
      %2101 = vmatpush1.msra.mxu0 0.0
      %2102 = vmatprep.subr.mxu0 0.0
      %2103 = vmatpush1.msra.mxu0 0.0
      %2104 = vmatprep.subr.mxu0 0.0
      %2105 = vmatpush1.msra.mxu0 0.0
      %2106 = vmatprep.subr.mxu0 0.0
      %2107 = vmatpush1.msra.mxu0 0.0
      %2108 = vmatprep.subr.mxu0 0.0
      %2109 = vmatpush1.msra.mxu0 0.0
      %2110 = vmatprep.subr.mxu0 0.0
      %2111 = vmatpush1.msra.mxu0 0.0
      %2112 = vmatprep.subr.mxu0 0.0
      %2113 = vmatpush1.msra.mxu0 0.0
      %2114 = vmatprep.subr.mxu0 0.0
      %2115 = vmatpush1.msra.mxu0 0.0
      %2116 = vmatprep.subr.mxu0 0.0
      %2117 = vmatpush1.msra.mxu0 0.0
      %2118 = vmatprep.subr.mxu0 0.0
      %2119 = vmatpush1.msra.mxu0 0.0
      %2120 = vmatprep.subr.mxu0 0.0
      %2121 = vmatpush1.msra.mxu0 0.0
      %2122 = vmatprep.subr.mxu0 0.0
      %2123 = vmatpush1.msra.mxu0 0.0
      %2124 = vmatprep.subr.mxu0 0.0
      %2125 = vmatpush1.msra.mxu0 0.0
      %2126 = vmatprep.subr.mxu0 0.0
      %2127 = vmatpush1.msra.mxu0 0.0
      %2128 = vmatprep.subr.mxu0 0.0
      %2129 = vmatpush1.msra.mxu0 0.0
      %2130 = vmatprep.mubr.f32.mxu0 0.0
      %2131 = vmatmul.mubr.f32.gmra.mrb[0].mxu0 %v2061
      %v2132 = vpop.f32.mrb[0].mxu0
      %v2133 = vadd.f32 %v2057, %v2132
      %v2134 = vpop.f32.mrb[0].mxu0
      %2135 = vmatprep.mubr.f32.mxu0 0.0
      %2136 = vmatmul.mubr.f32.gmra.mrb[0].mxu0 %v2064
      %v2137 = vpop.f32.mrb[0].mxu0
      %v2138 = vadd.f32 %v2057, %v2137
      %v2139 = vpop.f32.mrb[0].mxu0
      %2140 = vdwg.mxu0
      %2141 = vst.msk [vmem:[#allocation18] sm:$0xff] %vm2059, %v2133
      %2142 = vst.msk [vmem:[#allocation18 + $0x8] sm:$0xff] %vm2059, %v2138
    $region69: #{tpu_custom_call.1} parent=1 // pred_fallthru
      _
    // Predicated region
    $region70: #{tpu_custom_call.1} parent=1 // pred_check
      _
    $region71: #{tpu_custom_call.1} parent=1 // pred_check_branch
      %2144 = sbr.rel (0) target = $region73
    $region72: #{tpu_custom_call.1} parent=1 // pred_region
      %s2146 = ssub.s32 256, 256
      %2147 = vsyncadd [#allocation8], %s2146
      %s2148 = sshll.u32 [#allocation18], 4
      %s2149 = int_to_ptr.vmem [resolvable:$true] %s2148
      %2154 = dma.vmem_to_hbm [thread:$0]  %s2149, 256, %s7, [#allocation8], 128, 128, 8
    $region73: #{tpu_custom_call.1} parent=1 // pred_fallthru
      _
    // Predicated region
    $region74: #{tpu_custom_call.1} parent=1 // pred_check
      _
    $region75: #{tpu_custom_call.1} parent=1 // pred_check_branch
      %2156 = sbr.rel (0) target = $region77
    $region76: #{tpu_custom_call.1} parent=1 // pred_region
      %2157 = dma.done [#allocation8], 256
    $region77: #{tpu_custom_call.1} parent=1 // pred_fallthru
      _
    %2158 = vsyncpa [#allocation7], 1
    %2159 = vsyncpa [#allocation10], 1
    %2160 = vsyncpa [#allocation13], 1
    %2161 = vsyncpa [#allocation16], 1
    %2162 = vsyncpa [#allocation8], 1

</llo_original>
